<compile_context>
chip_gen: v6e
topology: v6e:2x2x1
jax: 0.10.0
libtpu: 0.0.40
codegen_flags: <defaults>
</compile_context>

<pallas_src>
import math
import functools

import jax
import jax.numpy as jnp
import numpy as np
from jax.experimental import pallas as pl
from jax.experimental.pallas import tpu as pltpu


# ---------------------------------------------------------------------------
# In-kernel helpers (all fp32)
# ---------------------------------------------------------------------------
def _layernorm(x, g, b, eps=1e-6):
    mu = jnp.mean(x, axis=-1, keepdims=True)
    xc = x - mu
    var = jnp.mean(xc * xc, axis=-1, keepdims=True)
    return xc * jax.lax.rsqrt(var + eps) * g + b


def _gelu_exact(x):
    # nn.GELU() default (approximate='none') -> erf-based GELU
    return 0.5 * x * (1.0 + jax.lax.erf(x * (1.0 / math.sqrt(2.0))))


def _heads_per_group(num_heads, head_dim, max_lanes=128):
    """Largest divisor of num_heads whose lane width fits in max_lanes."""
    g = 1
    for cand in range(1, num_heads + 1):
        if num_heads % cand == 0 and cand * head_dim <= max_lanes:
            g = cand
    return g


def _vmem_cap_bytes():
    try:
        cap = int(pltpu.get_tpu_info().vmem_capacity_bytes)
        if cap > 0:
            return cap
    except Exception:
        pass
    return 128 * 2**20  # v5e / v6e physical VMEM


# ---------------------------------------------------------------------------
# Kernel: one batch element per grid step; whole (S, D) slab lives in VMEM.
# ---------------------------------------------------------------------------
def encoder_block_kernel(num_heads, heads_per_group,
                         x_ref,
                         ln1g_ref, ln1b_ref,
                         wqkv_ref, bqkv_ref, wo_ref, bo_ref,
                         ln2g_ref, ln2b_ref,
                         w1_ref, b1_ref, w2_ref, b2_ref,
                         o_ref,
                         qkv_scratch, attn_scratch):
    x = x_ref[0]                              # (S, D) fp32
    S, D = x.shape
    hd = D // num_heads
    gsz = heads_per_group * hd                # lane width of one head group

    # ---- ln_1 + fused qkv projection ---------------------------------------
    # (1/sqrt(hd) scale is pre-folded into the q columns of w_qkv / b_qkv.)
    h = _layernorm(x, ln1g_ref[0], ln1b_ref[0]).astype(jnp.bfloat16)
    qkv = jnp.dot(h, wqkv_ref[...],
                  preferred_element_type=jnp.float32) + bqkv_ref[0]   # (S, 3D)
    # Single bf16 cast; scratch-backed so the unrolled head loop only keeps
    # small per-head slices live instead of the whole fp32 (S, 3D) value.
    qkv_scratch[...] = qkv.astype(jnp.bfloat16)

    # ---- multi-head self-attention, lane-aligned head groups ---------------
    for g in range(num_heads // heads_per_group):
        pv_parts = []
        for i in range(heads_per_group):
            off = (g * heads_per_group + i) * hd        # static slice offsets
            q_h = qkv_scratch[:, off:off + hd]
            k_h = qkv_scratch[:, D + off:D + off + hd]
            v_h = qkv_scratch[:, 2 * D + off:2 * D + off + hd]

            # Contract the last dim of both operands: no explicit k.T.
            s = jax.lax.dot_general(q_h, k_h, (((1,), (1,)), ((), ())),
                                    preferred_element_type=jnp.float32)
            s = s - jnp.max(s, axis=-1, keepdims=True)
            p = jnp.exp(s)
            p = p * pl.reciprocal(jnp.sum(p, axis=-1, keepdims=True),
                                  approx=True)
            pv_parts.append(jnp.dot(p.astype(jnp.bfloat16), v_h,
                                    preferred_element_type=jnp.float32))

        grp = (pv_parts[0] if heads_per_group == 1
               else jnp.concatenate(pv_parts, axis=-1))   # (S, gsz)
        # One lane-dense store per group (gsz is a multiple of 128 for the
        # usual hd=64 case, or the full row width for tiny configs).
        attn_scratch[:, g * gsz:(g + 1) * gsz] = grp.astype(jnp.bfloat16)

    attn = jnp.dot(attn_scratch[...], wo_ref[...],
                   preferred_element_type=jnp.float32) + bo_ref[0]
    x2 = attn + x                              # residual 1 (dropout = identity)

    # ---- ln_2 + MLP ---------------------------------------------------------
    y = _layernorm(x2, ln2g_ref[0], ln2b_ref[0]).astype(jnp.bfloat16)
    h1 = jnp.dot(y, w1_ref[...], preferred_element_type=jnp.float32) + b1_ref[0]
    h1 = _gelu_exact(h1).astype(jnp.bfloat16)
    y2 = jnp.dot(h1, w2_ref[...], preferred_element_type=jnp.float32) + b2_ref[0]

    o_ref[0] = x2 + y2                         # residual 2


# ---------------------------------------------------------------------------
# Wrapper
# ---------------------------------------------------------------------------
def encoder_block(x, params, num_heads):
    B, S, D = x.shape
    M = params["w1"].shape[1]
    assert D % num_heads == 0
    hd = D // num_heads
    hpg = _heads_per_group(num_heads, hd)
    assert hpg * (num_heads // hpg) == num_heads

    # Fold attention scale into the q part of the in-projection; cast matmul
    # weights to bf16 (biases / LN params stay fp32: they add to fp32 accum).
    q_scale = jnp.concatenate(
        [jnp.full((D,), 1.0 / math.sqrt(hd), jnp.float32),
         jnp.ones((2 * D,), jnp.float32)])
    w_qkv = (params["w_qkv"] * q_scale[None, :]).astype(jnp.bfloat16)
    b_qkv = params["b_qkv"] * q_scale[None, :]
    w_o = params["w_o"].astype(jnp.bfloat16)
    w1 = params["w1"].astype(jnp.bfloat16)
    w2 = params["w2"].astype(jnp.bfloat16)

    def rep(shape, single_buffer=False):
        n = len(shape)
        index_map = lambda b, _n=n: (0,) * _n
        if single_buffer:
            # Block index never changes -> one VMEM buffer is enough.
            try:
                return pl.BlockSpec(shape, index_map,
                                    pipeline_mode=pl.Buffered(1))
            except TypeError:
                pass
        return pl.BlockSpec(shape, index_map)

    in_specs = [
        pl.BlockSpec((1, S, D), lambda b: (b, 0, 0)),     # x
        rep((1, D)), rep((1, D)),                         # ln1 gamma / beta
        rep((D, 3 * D), single_buffer=True),              # qkv in-proj (bf16)
        rep((1, 3 * D)),                                  # qkv bias (fp32)
        rep((D, D), single_buffer=True),                  # out-proj weight
        rep((1, D)),                                      # out-proj bias
        rep((1, D)), rep((1, D)),                         # ln2 gamma / beta
        rep((D, M), single_buffer=True),                  # mlp linear 1 weight
        rep((1, M)),                                      # mlp linear 1 bias
        rep((M, D), single_buffer=True),                  # mlp linear 2 weight
        rep((1, D)),                                      # mlp linear 2 bias
    ]

    # --- compiler hints -------------------------------------------------------
    big_weight_bytes = (D * 3 * D + D * D + D * M + M * D) * 2      # bf16, 1-buf
    small_param_bytes = (3 * D + D + M + D + 4 * D) * 4 * 2         # fp32, 2-buf
    io_bytes = 2 * (2 * S * D * 4)                                  # x / o, 2-buf
    scratch_bytes = (S * 3 * D + S * D) * 2                         # bf16 scratch
    live_act_bytes = (6 * S * D + S * 3 * D + S * M + hpg * S * S) * 4
    est = (big_weight_bytes + small_param_bytes + io_bytes
           + scratch_bytes + live_act_bytes)
    cap = _vmem_cap_bytes()
    vmem_limit = int(min(3 * cap // 4, max(32 * 2**20, int(1.5 * est))))

    flops = B * (2 * S * D * 3 * D        # qkv projection
                 + 2 * 2 * S * S * D      # QK^T + PV over all heads
                 + 2 * S * D * D          # out projection
                 + 2 * 2 * S * D * M)     # mlp
    transcendentals = B * (num_heads * S * S + S * M)
    bytes_accessed = big_weight_bytes + small_param_bytes + 2 * B * S * D * 4

    return pl.pallas_call(
        functools.partial(encoder_block_kernel, num_heads, hpg),
        out_shape=jax.ShapeDtypeStruct((B, S, D), x.dtype),
        grid=(B,),
        in_specs=in_specs,
        out_specs=pl.BlockSpec((1, S, D), lambda b: (b, 0, 0)),
        scratch_shapes=[pltpu.VMEM((S, 3 * D), jnp.bfloat16),   # qkv (bf16)
                        pltpu.VMEM((S, D), jnp.bfloat16)],      # attn out (bf16)
        compiler_params=pltpu.CompilerParams(
            dimension_semantics=("parallel",),
            vmem_limit_bytes=vmem_limit),
        cost_estimate=pl.CostEstimate(
            flops=int(flops),
            transcendentals=int(transcendentals),
            bytes_accessed=int(bytes_accessed)),
    )(x,
      params["ln1_g"], params["ln1_b"],
      w_qkv, b_qkv, w_o, params["b_o"],
      params["ln2_g"], params["ln2_b"],
      w1, params["b1"], w2, params["b2"])


# ---------------------------------------------------------------------------
# Pure-JAX fp32 reference (for correctness check)
# ---------------------------------------------------------------------------
def encoder_block_ref(x, p, num_heads):
    def ln(z, g, b):
        mu = z.mean(-1, keepdims=True)
        var = ((z - mu) ** 2).mean(-1, keepdims=True)
        return (z - mu) / jnp.sqrt(var + 1e-6) * g + b

    B, S, D = x.shape
    hd = D // num_heads
    h = ln(x, p["ln1_g"][0], p["ln1_b"][0])
    qkv = h @ p["w_qkv"] + p["b_qkv"][0]
    q, k, v = jnp.split(qkv, 3, axis=-1)
    q = q.reshape(B, S, num_heads, hd).transpose(0, 2, 1, 3)
    k = k.reshape(B, S, num_heads, hd).transpose(0, 2, 1, 3)
    v = v.reshape(B, S, num_heads, hd).transpose(0, 2, 1, 3)
    s = jnp.einsum("bhqd,bhkd->bhqk", q, k) / math.sqrt(hd)
    a = jax.nn.softmax(s, axis=-1)
    o = jnp.einsum("bhqk,bhkd->bhqd", a, v).transpose(0, 2, 1, 3).reshape(B, S, D)
    o = o @ p["w_o"] + p["b_o"][0]
    x2 = o + x
    y = ln(x2, p["ln2_g"][0], p["ln2_b"][0])
    h1 = y @ p["w1"] + p["b1"][0]
    h1 = 0.5 * h1 * (1.0 + jax.lax.erf(h1 / math.sqrt(2.0)))
    y2 = h1 @ p["w2"] + p["b2"][0]
    return x2 + y2


# ---------------------------------------------------------------------------
# Deterministic parameter init (shapes from nn.MultiheadAttention / MLPBlock)
# ---------------------------------------------------------------------------
def init_params(key, hidden_dim, mlp_dim):
    D, M = hidden_dim, mlp_dim
    ks = jax.random.split(key, 6)

    def xavier(k, fan_in, fan_out, shape):
        lim = math.sqrt(6.0 / (fan_in + fan_out))
        return jax.random.uniform(k, shape, jnp.float32, -lim, lim)

    return {
        "ln1_g": jnp.ones((1, D), jnp.float32),
        "ln1_b": jnp.zeros((1, D), jnp.float32),
        # MHA in_proj (3D, D) xavier -> stored transposed as (D, 3D)
        "w_qkv": xavier(ks[0], D, 3 * D, (3 * D, D)).T,
        "b_qkv": jnp.zeros((1, 3 * D), jnp.float32),
        # MHA out_proj (D, D) -> transposed (D, D)
        "w_o": xavier(ks[1], D, D, (D, D)).T,
        "b_o": jnp.zeros((1, D), jnp.float32),
        "ln2_g": jnp.ones((1, D), jnp.float32),
        "ln2_b": jnp.zeros((1, D), jnp.float32),
        # MLP linear1 (M, D) xavier, bias ~ N(0, 1e-6) -> transposed (D, M)
        "w1": xavier(ks[2], D, M, (M, D)).T,
        "b1": 1e-6 * jax.random.normal(ks[3], (1, M), jnp.float32),
        # MLP linear2 (D, M) xavier -> transposed (M, D)
        "w2": xavier(ks[4], M, D, (D, M)).T,
        "b2": 1e-6 * jax.random.normal(ks[5], (1, D), jnp.float32),
    }


if __name__ == "__main__":
    B, S, D, H, MLP_DIM = 2, 8, 32, 4, 64

    key = jax.random.PRNGKey(0)
    kx, kp = jax.random.split(key)
    x = jax.random.normal(kx, (B, S, D), jnp.float32)
    params = init_params(kp, D, MLP_DIM)

    out = jax.block_until_ready(encoder_block(x, params, H))
    ref = jax.block_until_ready(encoder_block_ref(x, params, H))

    # bf16 MXU operands (fp32 accumulation) + approx softmax reciprocal ->
    # slightly relaxed tolerance vs. the pure-fp32 reference.
    np.testing.assert_allclose(np.asarray(out), np.asarray(ref),
                               rtol=5e-2, atol=5e-2)

    print("KERNEL_OK")
</pallas_src>

<mosaic_0001>
module attributes {stable_mosaic.version = 11 : i64} {
  func.func @encoder_block_kernel(%arg0: i32, %arg1: memref<1x8x32xf32, #tpu.memory_space<vmem>>, %arg2: memref<1x32xf32, #tpu.memory_space<vmem>>, %arg3: memref<1x32xf32, #tpu.memory_space<vmem>>, %arg4: memref<32x96xbf16, #tpu.memory_space<vmem>>, %arg5: memref<1x96xf32, #tpu.memory_space<vmem>>, %arg6: memref<32x32xbf16, #tpu.memory_space<vmem>>, %arg7: memref<1x32xf32, #tpu.memory_space<vmem>>, %arg8: memref<1x32xf32, #tpu.memory_space<vmem>>, %arg9: memref<1x32xf32, #tpu.memory_space<vmem>>, %arg10: memref<32x64xbf16, #tpu.memory_space<vmem>>, %arg11: memref<1x64xf32, #tpu.memory_space<vmem>>, %arg12: memref<64x32xbf16, #tpu.memory_space<vmem>>, %arg13: memref<1x32xf32, #tpu.memory_space<vmem>>, %arg14: memref<1x8x32xf32, #tpu.memory_space<vmem>>, %arg15: memref<8x96xbf16, #tpu.memory_space<vmem>>, %arg16: memref<8x32xbf16, #tpu.memory_space<vmem>>) attributes {dimension_semantics = [#tpu.dimension_semantics<parallel>], iteration_bounds = array<i64: 2>, scalar_prefetch = 0 : i64, scratch_operands = 2 : i64, tpu.core_type = #tpu.core_type<tc>, window_params = [{transform_indices = @transform_0, window_bounds = array<i64: 1, 8, 32>}, {pipeline_mode = #tpu.pipeline_mode<synchronous>, transform_indices = @transform_1, window_bounds = array<i64: 1, 32>}, {pipeline_mode = #tpu.pipeline_mode<synchronous>, transform_indices = @transform_2, window_bounds = array<i64: 1, 32>}, {pipeline_mode = #tpu.pipeline_mode<synchronous>, transform_indices = @transform_3, window_bounds = array<i64: 32, 96>}, {pipeline_mode = #tpu.pipeline_mode<synchronous>, transform_indices = @transform_4, window_bounds = array<i64: 1, 96>}, {pipeline_mode = #tpu.pipeline_mode<synchronous>, transform_indices = @transform_5, window_bounds = array<i64: 32, 32>}, {pipeline_mode = #tpu.pipeline_mode<synchronous>, transform_indices = @transform_6, window_bounds = array<i64: 1, 32>}, {pipeline_mode = #tpu.pipeline_mode<synchronous>, transform_indices = @transform_7, window_bounds = array<i64: 1, 32>}, {pipeline_mode = #tpu.pipeline_mode<synchronous>, transform_indices = @transform_8, window_bounds = array<i64: 1, 32>}, {pipeline_mode = #tpu.pipeline_mode<synchronous>, transform_indices = @transform_9, window_bounds = array<i64: 32, 64>}, {pipeline_mode = #tpu.pipeline_mode<synchronous>, transform_indices = @transform_10, window_bounds = array<i64: 1, 64>}, {pipeline_mode = #tpu.pipeline_mode<synchronous>, transform_indices = @transform_11, window_bounds = array<i64: 64, 32>}, {pipeline_mode = #tpu.pipeline_mode<synchronous>, transform_indices = @transform_12, window_bounds = array<i64: 1, 32>}, {transform_indices = @transform_13, window_bounds = array<i64: 1, 8, 32>}]} {
    %c0 = arith.constant 0 : index
    %c0_0 = arith.constant 0 : index
    %c0_1 = arith.constant 0 : index
    %0 = vector.load %arg1[%c0, %c0_0, %c0_1] : memref<1x8x32xf32, #tpu.memory_space<vmem>>, vector<1x8x32xf32>
    %1 = vector.shape_cast %0 : vector<1x8x32xf32> to vector<8x32xf32>
    %c0_2 = arith.constant 0 : index
    %c0_3 = arith.constant 0 : index
    %2 = vector.load %arg2[%c0_2, %c0_3] : memref<1x32xf32, #tpu.memory_space<vmem>>, vector<1x32xf32>
    %3 = vector.shape_cast %2 : vector<1x32xf32> to vector<32xf32>
    %c0_4 = arith.constant 0 : index
    %c0_5 = arith.constant 0 : index
    %4 = vector.load %arg3[%c0_4, %c0_5] : memref<1x32xf32, #tpu.memory_space<vmem>>, vector<1x32xf32>
    %5 = vector.shape_cast %4 : vector<1x32xf32> to vector<32xf32>
    %cst = arith.constant dense<0.000000e+00> : vector<8xf32>
    %6 = vector.multi_reduction <add>, %1, %cst [1] : vector<8x32xf32> to vector<8xf32>
    %7 = vector.shape_cast %6 : vector<8xf32> to vector<8x1xf32>
    %cst_6 = arith.constant 3.200000e+01 : f32
    %8 = vector.broadcast %cst_6 : f32 to vector<8x1xf32>
    %9 = arith.divf %7, %8 : vector<8x1xf32>
    %10 = vector.broadcast %9 : vector<8x1xf32> to vector<8x32xf32>
    %11 = arith.subf %1, %10 : vector<8x32xf32>
    %12 = arith.mulf %11, %11 : vector<8x32xf32>
    %cst_7 = arith.constant dense<0.000000e+00> : vector<8xf32>
    %13 = vector.multi_reduction <add>, %12, %cst_7 [1] : vector<8x32xf32> to vector<8xf32>
    %14 = vector.shape_cast %13 : vector<8xf32> to vector<8x1xf32>
    %cst_8 = arith.constant 3.200000e+01 : f32
    %15 = vector.broadcast %cst_8 : f32 to vector<8x1xf32>
    %16 = arith.divf %14, %15 : vector<8x1xf32>
    %cst_9 = arith.constant 9.99999997E-7 : f32
    %17 = vector.broadcast %cst_9 : f32 to vector<8x1xf32>
    %18 = arith.addf %16, %17 : vector<8x1xf32>
    %19 = math.rsqrt %18 : vector<8x1xf32>
    %20 = vector.broadcast %19 : vector<8x1xf32> to vector<8x32xf32>
    %21 = arith.mulf %11, %20 : vector<8x32xf32>
    %22 = vector.shape_cast %3 : vector<32xf32> to vector<1x32xf32>
    %23 = vector.broadcast %22 : vector<1x32xf32> to vector<8x32xf32>
    %24 = arith.mulf %21, %23 : vector<8x32xf32>
    %25 = vector.shape_cast %5 : vector<32xf32> to vector<1x32xf32>
    %26 = vector.broadcast %25 : vector<1x32xf32> to vector<8x32xf32>
    %27 = arith.addf %24, %26 : vector<8x32xf32>
    %28 = arith.truncf %27 : vector<8x32xf32> to vector<8x32xbf16>
    %c0_10 = arith.constant 0 : index
    %c0_11 = arith.constant 0 : index
    %29 = vector.load %arg4[%c0_10, %c0_11] : memref<32x96xbf16, #tpu.memory_space<vmem>>, vector<32x96xbf16>
    %cst_12 = arith.constant dense<0.000000e+00> : vector<8x96xf32>
    %30 = tpu.matmul %28, %29, %cst_12 {dimension_numbers = #tpu.dot_dimension_numbers<[1], [0], [0], [1], [0, 0, 1, 1], [], []>} : vector<8x32xbf16>, vector<32x96xbf16>, vector<8x96xf32> -> vector<8x96xf32>
    %c0_13 = arith.constant 0 : index
    %c0_14 = arith.constant 0 : index
    %31 = vector.load %arg5[%c0_13, %c0_14] : memref<1x96xf32, #tpu.memory_space<vmem>>, vector<1x96xf32>
    %32 = vector.shape_cast %31 : vector<1x96xf32> to vector<96xf32>
    %33 = vector.shape_cast %32 : vector<96xf32> to vector<1x96xf32>
    %34 = vector.broadcast %33 : vector<1x96xf32> to vector<8x96xf32>
    %35 = arith.addf %30, %34 : vector<8x96xf32>
    %36 = arith.truncf %35 : vector<8x96xf32> to vector<8x96xbf16>
    %c0_15 = arith.constant 0 : index
    %c0_16 = arith.constant 0 : index
    %37 = vector.load %arg15[%c0_15, %c0_16] : memref<8x96xbf16, #tpu.memory_space<vmem>>, vector<8x96xbf16>
    tpu.vector_store %arg15[%c0_15, %c0_16], %36 {strides = array<i32>} : memref<8x96xbf16, #tpu.memory_space<vmem>>, vector<8x96xbf16>,
    %c0_17 = arith.constant 0 : index
    %c0_18 = arith.constant 0 : index
    %38 = vector.load %arg15[%c0_17, %c0_18] : memref<8x96xbf16, #tpu.memory_space<vmem>>, vector<8x8xbf16>
    %c0_19 = arith.constant 0 : index
    %c32 = arith.constant 32 : index
    %39 = vector.load %arg15[%c0_19, %c32] : memref<8x96xbf16, #tpu.memory_space<vmem>>, vector<8x8xbf16>
    %c0_20 = arith.constant 0 : index
    %c64 = arith.constant 64 : index
    %40 = vector.load %arg15[%c0_20, %c64] : memref<8x96xbf16, #tpu.memory_space<vmem>>, vector<8x8xbf16>
    %cst_21 = arith.constant dense<0.000000e+00> : vector<8x8xf32>
    %41 = tpu.matmul %38, %39, %cst_21 {dimension_numbers = #tpu.dot_dimension_numbers<[1], [1], [0], [0], [0, 0, 1, 0], [], []>} : vector<8x8xbf16>, vector<8x8xbf16>, vector<8x8xf32> -> vector<8x8xf32>
    %cst_22 = arith.constant dense<0xFF800000> : vector<8xf32>
    %42 = vector.multi_reduction <maximumf>, %41, %cst_22 [1] : vector<8x8xf32> to vector<8xf32>
    %43 = vector.shape_cast %42 : vector<8xf32> to vector<8x1xf32>
    %44 = vector.broadcast %43 : vector<8x1xf32> to vector<8x8xf32>
    %45 = arith.subf %41, %44 : vector<8x8xf32>
    %46 = math.exp %45 : vector<8x8xf32>
    %cst_23 = arith.constant dense<0.000000e+00> : vector<8xf32>
    %47 = vector.multi_reduction <add>, %46, %cst_23 [1] : vector<8x8xf32> to vector<8xf32>
    %48 = vector.shape_cast %47 : vector<8xf32> to vector<8x1xf32>
    %49 = tpu.reciprocal %48 {approx = true} : vector<8x1xf32> -> vector<8x1xf32>
    %50 = vector.broadcast %49 : vector<8x1xf32> to vector<8x8xf32>
    %51 = arith.mulf %46, %50 : vector<8x8xf32>
    %52 = arith.truncf %51 : vector<8x8xf32> to vector<8x8xbf16>
    %cst_24 = arith.constant dense<0.000000e+00> : vector<8x8xf32>
    %53 = tpu.matmul %52, %40, %cst_24 {dimension_numbers = #tpu.dot_dimension_numbers<[1], [0], [0], [1], [0, 0, 1, 1], [], []>} : vector<8x8xbf16>, vector<8x8xbf16>, vector<8x8xf32> -> vector<8x8xf32>
    %c0_25 = arith.constant 0 : index
    %c8 = arith.constant 8 : index
    %54 = vector.load %arg15[%c0_25, %c8] : memref<8x96xbf16, #tpu.memory_space<vmem>>, vector<8x8xbf16>
    %c0_26 = arith.constant 0 : index
    %c40 = arith.constant 40 : index
    %55 = vector.load %arg15[%c0_26, %c40] : memref<8x96xbf16, #tpu.memory_space<vmem>>, vector<8x8xbf16>
    %c0_27 = arith.constant 0 : index
    %c72 = arith.constant 72 : index
    %56 = vector.load %arg15[%c0_27, %c72] : memref<8x96xbf16, #tpu.memory_space<vmem>>, vector<8x8xbf16>
    %cst_28 = arith.constant dense<0.000000e+00> : vector<8x8xf32>
    %57 = tpu.matmul %54, %55, %cst_28 {dimension_numbers = #tpu.dot_dimension_numbers<[1], [1], [0], [0], [0, 0, 1, 0], [], []>} : vector<8x8xbf16>, vector<8x8xbf16>, vector<8x8xf32> -> vector<8x8xf32>
    %cst_29 = arith.constant dense<0xFF800000> : vector<8xf32>
    %58 = vector.multi_reduction <maximumf>, %57, %cst_29 [1] : vector<8x8xf32> to vector<8xf32>
    %59 = vector.shape_cast %58 : vector<8xf32> to vector<8x1xf32>
    %60 = vector.broadcast %59 : vector<8x1xf32> to vector<8x8xf32>
    %61 = arith.subf %57, %60 : vector<8x8xf32>
    %62 = math.exp %61 : vector<8x8xf32>
    %cst_30 = arith.constant dense<0.000000e+00> : vector<8xf32>
    %63 = vector.multi_reduction <add>, %62, %cst_30 [1] : vector<8x8xf32> to vector<8xf32>
    %64 = vector.shape_cast %63 : vector<8xf32> to vector<8x1xf32>
    %65 = tpu.reciprocal %64 {approx = true} : vector<8x1xf32> -> vector<8x1xf32>
    %66 = vector.broadcast %65 : vector<8x1xf32> to vector<8x8xf32>
    %67 = arith.mulf %62, %66 : vector<8x8xf32>
    %68 = arith.truncf %67 : vector<8x8xf32> to vector<8x8xbf16>
    %cst_31 = arith.constant dense<0.000000e+00> : vector<8x8xf32>
    %69 = tpu.matmul %68, %56, %cst_31 {dimension_numbers = #tpu.dot_dimension_numbers<[1], [0], [0], [1], [0, 0, 1, 1], [], []>} : vector<8x8xbf16>, vector<8x8xbf16>, vector<8x8xf32> -> vector<8x8xf32>
    %c0_32 = arith.constant 0 : index
    %c16 = arith.constant 16 : index
    %70 = vector.load %arg15[%c0_32, %c16] : memref<8x96xbf16, #tpu.memory_space<vmem>>, vector<8x8xbf16>
    %c0_33 = arith.constant 0 : index
    %c48 = arith.constant 48 : index
    %71 = vector.load %arg15[%c0_33, %c48] : memref<8x96xbf16, #tpu.memory_space<vmem>>, vector<8x8xbf16>
    %c0_34 = arith.constant 0 : index
    %c80 = arith.constant 80 : index
    %72 = vector.load %arg15[%c0_34, %c80] : memref<8x96xbf16, #tpu.memory_space<vmem>>, vector<8x8xbf16>
    %cst_35 = arith.constant dense<0.000000e+00> : vector<8x8xf32>
    %73 = tpu.matmul %70, %71, %cst_35 {dimension_numbers = #tpu.dot_dimension_numbers<[1], [1], [0], [0], [0, 0, 1, 0], [], []>} : vector<8x8xbf16>, vector<8x8xbf16>, vector<8x8xf32> -> vector<8x8xf32>
    %cst_36 = arith.constant dense<0xFF800000> : vector<8xf32>
    %74 = vector.multi_reduction <maximumf>, %73, %cst_36 [1] : vector<8x8xf32> to vector<8xf32>
    %75 = vector.shape_cast %74 : vector<8xf32> to vector<8x1xf32>
    %76 = vector.broadcast %75 : vector<8x1xf32> to vector<8x8xf32>
    %77 = arith.subf %73, %76 : vector<8x8xf32>
    %78 = math.exp %77 : vector<8x8xf32>
    %cst_37 = arith.constant dense<0.000000e+00> : vector<8xf32>
    %79 = vector.multi_reduction <add>, %78, %cst_37 [1] : vector<8x8xf32> to vector<8xf32>
    %80 = vector.shape_cast %79 : vector<8xf32> to vector<8x1xf32>
    %81 = tpu.reciprocal %80 {approx = true} : vector<8x1xf32> -> vector<8x1xf32>
    %82 = vector.broadcast %81 : vector<8x1xf32> to vector<8x8xf32>
    %83 = arith.mulf %78, %82 : vector<8x8xf32>
    %84 = arith.truncf %83 : vector<8x8xf32> to vector<8x8xbf16>
    %cst_38 = arith.constant dense<0.000000e+00> : vector<8x8xf32>
    %85 = tpu.matmul %84, %72, %cst_38 {dimension_numbers = #tpu.dot_dimension_numbers<[1], [0], [0], [1], [0, 0, 1, 1], [], []>} : vector<8x8xbf16>, vector<8x8xbf16>, vector<8x8xf32> -> vector<8x8xf32>
    %c0_39 = arith.constant 0 : index
    %c24 = arith.constant 24 : index
    %86 = vector.load %arg15[%c0_39, %c24] : memref<8x96xbf16, #tpu.memory_space<vmem>>, vector<8x8xbf16>
    %c0_40 = arith.constant 0 : index
    %c56 = arith.constant 56 : index
    %87 = vector.load %arg15[%c0_40, %c56] : memref<8x96xbf16, #tpu.memory_space<vmem>>, vector<8x8xbf16>
    %c0_41 = arith.constant 0 : index
    %c88 = arith.constant 88 : index
    %88 = vector.load %arg15[%c0_41, %c88] : memref<8x96xbf16, #tpu.memory_space<vmem>>, vector<8x8xbf16>
    %cst_42 = arith.constant dense<0.000000e+00> : vector<8x8xf32>
    %89 = tpu.matmul %86, %87, %cst_42 {dimension_numbers = #tpu.dot_dimension_numbers<[1], [1], [0], [0], [0, 0, 1, 0], [], []>} : vector<8x8xbf16>, vector<8x8xbf16>, vector<8x8xf32> -> vector<8x8xf32>
    %cst_43 = arith.constant dense<0xFF800000> : vector<8xf32>
    %90 = vector.multi_reduction <maximumf>, %89, %cst_43 [1] : vector<8x8xf32> to vector<8xf32>
    %91 = vector.shape_cast %90 : vector<8xf32> to vector<8x1xf32>
    %92 = vector.broadcast %91 : vector<8x1xf32> to vector<8x8xf32>
    %93 = arith.subf %89, %92 : vector<8x8xf32>
    %94 = math.exp %93 : vector<8x8xf32>
    %cst_44 = arith.constant dense<0.000000e+00> : vector<8xf32>
    %95 = vector.multi_reduction <add>, %94, %cst_44 [1] : vector<8x8xf32> to vector<8xf32>
    %96 = vector.shape_cast %95 : vector<8xf32> to vector<8x1xf32>
    %97 = tpu.reciprocal %96 {approx = true} : vector<8x1xf32> -> vector<8x1xf32>
    %98 = vector.broadcast %97 : vector<8x1xf32> to vector<8x8xf32>
    %99 = arith.mulf %94, %98 : vector<8x8xf32>
    %100 = arith.truncf %99 : vector<8x8xf32> to vector<8x8xbf16>
    %cst_45 = arith.constant dense<0.000000e+00> : vector<8x8xf32>
    %101 = tpu.matmul %100, %88, %cst_45 {dimension_numbers = #tpu.dot_dimension_numbers<[1], [0], [0], [1], [0, 0, 1, 1], [], []>} : vector<8x8xbf16>, vector<8x8xbf16>, vector<8x8xf32> -> vector<8x8xf32>
    %102 = tpu.concatenate %53, %69, %85, %101 in 1 : vector<8x8xf32>, vector<8x8xf32>, vector<8x8xf32>, vector<8x8xf32> -> vector<8x32xf32>
    %103 = arith.truncf %102 : vector<8x32xf32> to vector<8x32xbf16>
    %c0_46 = arith.constant 0 : index
    %c0_47 = arith.constant 0 : index
    %104 = vector.load %arg16[%c0_46, %c0_47] : memref<8x32xbf16, #tpu.memory_space<vmem>>, vector<8x32xbf16>
    tpu.vector_store %arg16[%c0_46, %c0_47], %103 {strides = array<i32>} : memref<8x32xbf16, #tpu.memory_space<vmem>>, vector<8x32xbf16>,
    %c0_48 = arith.constant 0 : index
    %c0_49 = arith.constant 0 : index
    %105 = vector.load %arg16[%c0_48, %c0_49] : memref<8x32xbf16, #tpu.memory_space<vmem>>, vector<8x32xbf16>
    %c0_50 = arith.constant 0 : index
    %c0_51 = arith.constant 0 : index
    %106 = vector.load %arg6[%c0_50, %c0_51] : memref<32x32xbf16, #tpu.memory_space<vmem>>, vector<32x32xbf16>
    %cst_52 = arith.constant dense<0.000000e+00> : vector<8x32xf32>
    %107 = tpu.matmul %105, %106, %cst_52 {dimension_numbers = #tpu.dot_dimension_numbers<[1], [0], [0], [1], [0, 0, 1, 1], [], []>} : vector<8x32xbf16>, vector<32x32xbf16>, vector<8x32xf32> -> vector<8x32xf32>
    %c0_53 = arith.constant 0 : index
    %c0_54 = arith.constant 0 : index
    %108 = vector.load %arg7[%c0_53, %c0_54] : memref<1x32xf32, #tpu.memory_space<vmem>>, vector<1x32xf32>
    %109 = vector.shape_cast %108 : vector<1x32xf32> to vector<32xf32>
    %110 = vector.shape_cast %109 : vector<32xf32> to vector<1x32xf32>
    %111 = vector.broadcast %110 : vector<1x32xf32> to vector<8x32xf32>
    %112 = arith.addf %107, %111 : vector<8x32xf32>
    %113 = arith.addf %112, %1 : vector<8x32xf32>
    %c0_55 = arith.constant 0 : index
    %c0_56 = arith.constant 0 : index
    %114 = vector.load %arg8[%c0_55, %c0_56] : memref<1x32xf32, #tpu.memory_space<vmem>>, vector<1x32xf32>
    %115 = vector.shape_cast %114 : vector<1x32xf32> to vector<32xf32>
    %c0_57 = arith.constant 0 : index
    %c0_58 = arith.constant 0 : index
    %116 = vector.load %arg9[%c0_57, %c0_58] : memref<1x32xf32, #tpu.memory_space<vmem>>, vector<1x32xf32>
    %117 = vector.shape_cast %116 : vector<1x32xf32> to vector<32xf32>
    %cst_59 = arith.constant dense<0.000000e+00> : vector<8xf32>
    %118 = vector.multi_reduction <add>, %113, %cst_59 [1] : vector<8x32xf32> to vector<8xf32>
    %119 = vector.shape_cast %118 : vector<8xf32> to vector<8x1xf32>
    %cst_60 = arith.constant 3.200000e+01 : f32
    %120 = vector.broadcast %cst_60 : f32 to vector<8x1xf32>
    %121 = arith.divf %119, %120 : vector<8x1xf32>
    %122 = vector.broadcast %121 : vector<8x1xf32> to vector<8x32xf32>
    %123 = arith.subf %113, %122 : vector<8x32xf32>
    %124 = arith.mulf %123, %123 : vector<8x32xf32>
    %cst_61 = arith.constant dense<0.000000e+00> : vector<8xf32>
    %125 = vector.multi_reduction <add>, %124, %cst_61 [1] : vector<8x32xf32> to vector<8xf32>
    %126 = vector.shape_cast %125 : vector<8xf32> to vector<8x1xf32>
    %cst_62 = arith.constant 3.200000e+01 : f32
    %127 = vector.broadcast %cst_62 : f32 to vector<8x1xf32>
    %128 = arith.divf %126, %127 : vector<8x1xf32>
    %cst_63 = arith.constant 9.99999997E-7 : f32
    %129 = vector.broadcast %cst_63 : f32 to vector<8x1xf32>
    %130 = arith.addf %128, %129 : vector<8x1xf32>
    %131 = math.rsqrt %130 : vector<8x1xf32>
    %132 = vector.broadcast %131 : vector<8x1xf32> to vector<8x32xf32>
    %133 = arith.mulf %123, %132 : vector<8x32xf32>
    %134 = vector.shape_cast %115 : vector<32xf32> to vector<1x32xf32>
    %135 = vector.broadcast %134 : vector<1x32xf32> to vector<8x32xf32>
    %136 = arith.mulf %133, %135 : vector<8x32xf32>
    %137 = vector.shape_cast %117 : vector<32xf32> to vector<1x32xf32>
    %138 = vector.broadcast %137 : vector<1x32xf32> to vector<8x32xf32>
    %139 = arith.addf %136, %138 : vector<8x32xf32>
    %140 = arith.truncf %139 : vector<8x32xf32> to vector<8x32xbf16>
    %c0_64 = arith.constant 0 : index
    %c0_65 = arith.constant 0 : index
    %141 = vector.load %arg10[%c0_64, %c0_65] : memref<32x64xbf16, #tpu.memory_space<vmem>>, vector<32x64xbf16>
    %cst_66 = arith.constant dense<0.000000e+00> : vector<8x64xf32>
    %142 = tpu.matmul %140, %141, %cst_66 {dimension_numbers = #tpu.dot_dimension_numbers<[1], [0], [0], [1], [0, 0, 1, 1], [], []>} : vector<8x32xbf16>, vector<32x64xbf16>, vector<8x64xf32> -> vector<8x64xf32>
    %c0_67 = arith.constant 0 : index
    %c0_68 = arith.constant 0 : index
    %143 = vector.load %arg11[%c0_67, %c0_68] : memref<1x64xf32, #tpu.memory_space<vmem>>, vector<1x64xf32>
    %144 = vector.shape_cast %143 : vector<1x64xf32> to vector<64xf32>
    %145 = vector.shape_cast %144 : vector<64xf32> to vector<1x64xf32>
    %146 = vector.broadcast %145 : vector<1x64xf32> to vector<8x64xf32>
    %147 = arith.addf %142, %146 : vector<8x64xf32>
    %cst_69 = arith.constant 5.000000e-01 : f32
    %148 = vector.broadcast %cst_69 : f32 to vector<8x64xf32>
    %149 = arith.mulf %148, %147 : vector<8x64xf32>
    %cst_70 = arith.constant 0.707106769 : f32
    %150 = vector.broadcast %cst_70 : f32 to vector<8x64xf32>
    %151 = arith.mulf %147, %150 : vector<8x64xf32>
    %152 = math.erf %151 : vector<8x64xf32>
    %cst_71 = arith.constant 1.000000e+00 : f32
    %153 = vector.broadcast %cst_71 : f32 to vector<8x64xf32>
    %154 = arith.addf %153, %152 : vector<8x64xf32>
    %155 = arith.mulf %149, %154 : vector<8x64xf32>
    %156 = arith.truncf %155 : vector<8x64xf32> to vector<8x64xbf16>
    %c0_72 = arith.constant 0 : index
    %c0_73 = arith.constant 0 : index
    %157 = vector.load %arg12[%c0_72, %c0_73] : memref<64x32xbf16, #tpu.memory_space<vmem>>, vector<64x32xbf16>
    %cst_74 = arith.constant dense<0.000000e+00> : vector<8x32xf32>
    %158 = tpu.matmul %156, %157, %cst_74 {dimension_numbers = #tpu.dot_dimension_numbers<[1], [0], [0], [1], [0, 0, 1, 1], [], []>} : vector<8x64xbf16>, vector<64x32xbf16>, vector<8x32xf32> -> vector<8x32xf32>
    %c0_75 = arith.constant 0 : index
    %c0_76 = arith.constant 0 : index
    %159 = vector.load %arg13[%c0_75, %c0_76] : memref<1x32xf32, #tpu.memory_space<vmem>>, vector<1x32xf32>
    %160 = vector.shape_cast %159 : vector<1x32xf32> to vector<32xf32>
    %161 = vector.shape_cast %160 : vector<32xf32> to vector<1x32xf32>
    %162 = vector.broadcast %161 : vector<1x32xf32> to vector<8x32xf32>
    %163 = arith.addf %158, %162 : vector<8x32xf32>
    %164 = arith.addf %113, %163 : vector<8x32xf32>
    %c0_77 = arith.constant 0 : index
    %c0_78 = arith.constant 0 : index
    %c0_79 = arith.constant 0 : index
    %165 = vector.load %arg14[%c0_77, %c0_78, %c0_79] : memref<1x8x32xf32, #tpu.memory_space<vmem>>, vector<1x8x32xf32>
    %166 = vector.shape_cast %165 : vector<1x8x32xf32> to vector<8x32xf32>
    %167 = vector.shape_cast %164 : vector<8x32xf32> to vector<1x8x32xf32>
    tpu.vector_store %arg14[%c0_77, %c0_78, %c0_79], %167 {strides = array<i32>} : memref<1x8x32xf32, #tpu.memory_space<vmem>>, vector<1x8x32xf32>,
    return
  }
  func.func @transform_0(%arg0: i32) -> (i32, i32, i32) {
    %c0_i32 = arith.constant 0 : i32
    %c0_i32_0 = arith.constant 0 : i32
    %c0_i32_1 = arith.constant 0 : i32
    return %arg0, %c0_i32, %c0_i32_0 : i32, i32, i32
  }
  func.func @transform_1(%arg0: i32) -> (i32, i32) {
    %c0_i32 = arith.constant 0 : i32
    %c0_i32_0 = arith.constant 0 : i32
    %c0_i32_1 = arith.constant 0 : i32
    return %c0_i32, %c0_i32_0 : i32, i32
  }
  func.func @transform_2(%arg0: i32) -> (i32, i32) {
    %c0_i32 = arith.constant 0 : i32
    %c0_i32_0 = arith.constant 0 : i32
    %c0_i32_1 = arith.constant 0 : i32
    return %c0_i32, %c0_i32_0 : i32, i32
  }
  func.func @transform_3(%arg0: i32) -> (i32, i32) {
    %c0_i32 = arith.constant 0 : i32
    %c0_i32_0 = arith.constant 0 : i32
    %c0_i32_1 = arith.constant 0 : i32
    return %c0_i32, %c0_i32_0 : i32, i32
  }
  func.func @transform_4(%arg0: i32) -> (i32, i32) {
    %c0_i32 = arith.constant 0 : i32
    %c0_i32_0 = arith.constant 0 : i32
    %c0_i32_1 = arith.constant 0 : i32
    return %c0_i32, %c0_i32_0 : i32, i32
  }
  func.func @transform_5(%arg0: i32) -> (i32, i32) {
    %c0_i32 = arith.constant 0 : i32
    %c0_i32_0 = arith.constant 0 : i32
    %c0_i32_1 = arith.constant 0 : i32
    return %c0_i32, %c0_i32_0 : i32, i32
  }
  func.func @transform_6(%arg0: i32) -> (i32, i32) {
    %c0_i32 = arith.constant 0 : i32
    %c0_i32_0 = arith.constant 0 : i32
    %c0_i32_1 = arith.constant 0 : i32
    return %c0_i32, %c0_i32_0 : i32, i32
  }
  func.func @transform_7(%arg0: i32) -> (i32, i32) {
    %c0_i32 = arith.constant 0 : i32
    %c0_i32_0 = arith.constant 0 : i32
    %c0_i32_1 = arith.constant 0 : i32
    return %c0_i32, %c0_i32_0 : i32, i32
  }
  func.func @transform_8(%arg0: i32) -> (i32, i32) {
    %c0_i32 = arith.constant 0 : i32
    %c0_i32_0 = arith.constant 0 : i32
    %c0_i32_1 = arith.constant 0 : i32
    return %c0_i32, %c0_i32_0 : i32, i32
  }
  func.func @transform_9(%arg0: i32) -> (i32, i32) {
    %c0_i32 = arith.constant 0 : i32
    %c0_i32_0 = arith.constant 0 : i32
    %c0_i32_1 = arith.constant 0 : i32
    return %c0_i32, %c0_i32_0 : i32, i32
  }
  func.func @transform_10(%arg0: i32) -> (i32, i32) {
    %c0_i32 = arith.constant 0 : i32
    %c0_i32_0 = arith.constant 0 : i32
    %c0_i32_1 = arith.constant 0 : i32
    return %c0_i32, %c0_i32_0 : i32, i32
  }
  func.func @transform_11(%arg0: i32) -> (i32, i32) {
    %c0_i32 = arith.constant 0 : i32
    %c0_i32_0 = arith.constant 0 : i32
    %c0_i32_1 = arith.constant 0 : i32
    return %c0_i32, %c0_i32_0 : i32, i32
  }
  func.func @transform_12(%arg0: i32) -> (i32, i32) {
    %c0_i32 = arith.constant 0 : i32
    %c0_i32_0 = arith.constant 0 : i32
    %c0_i32_1 = arith.constant 0 : i32
    return %c0_i32, %c0_i32_0 : i32, i32
  }
  func.func @transform_13(%arg0: i32) -> (i32, i32, i32) {
    %c0_i32 = arith.constant 0 : i32
    %c0_i32_0 = arith.constant 0 : i32
    %c0_i32_1 = arith.constant 0 : i32
    return %arg0, %c0_i32, %c0_i32_0 : i32, i32, i32
  }
}

</mosaic_0001>

<llo_original>
// kernel: tpu_custom_call.1
$region0: #{tpu_custom_call.1}
  #allocation0 [shape = 'u32[]', space=smem, size = 0x4, offset = 0x4, fixed_abs, tag = 'smem constant byte address 0x4 - core index']
  #allocation1 [shape = 'u32[144,128]{1,0:T(1,128)}', space=vmem, size = 0x12000, scoped, tag = 'internal scratch']
  #allocation2 [shape = 'bf16[8,96]{1,0:T(8,128)(2,1)}', space=vmem, size = 0x800, scoped, tag = 'scratch operand']
  #allocation3 [shape = 'bf16[8,32]{1,0:T(8,128)(2,1)}', space=vmem, size = 0x800, scoped, tag = 'scratch operand']
  %s0 = inlined_call_operand.vmem [shape: f32[2,8,32], index: 0, kind: input, shape index: {}]
  %s1 = inlined_call_operand.vmem [shape: f32[1,32], index: 1, kind: input, shape index: {}]
  %s2 = inlined_call_operand.vmem [shape: f32[1,32], index: 2, kind: input, shape index: {}]
  %s3 = inlined_call_operand.vmem [shape: bf16[32,96], index: 3, kind: input, shape index: {}]
  %s4 = inlined_call_operand.vmem [shape: f32[1,96], index: 4, kind: input, shape index: {}]
  %s5 = inlined_call_operand.vmem [shape: bf16[32,32], index: 5, kind: input, shape index: {}]
  %s6 = inlined_call_operand.vmem [shape: f32[1,32], index: 6, kind: input, shape index: {}]
  %s7 = inlined_call_operand.hbm [shape: f32[1,32], index: 7, kind: input, shape index: {}]
  %s8 = inlined_call_operand.hbm [shape: f32[1,32], index: 8, kind: input, shape index: {}]
  %s9 = inlined_call_operand.hbm [shape: bf16[32,64], index: 9, kind: input, shape index: {}]
  %s10 = inlined_call_operand.hbm [shape: f32[1,64], index: 10, kind: input, shape index: {}]
  %s11 = inlined_call_operand.vmem [shape: bf16[64,32], index: 11, kind: input, shape index: {}]
  %s12 = inlined_call_operand.vmem [shape: f32[1,32], index: 12, kind: input, shape index: {}]
  %s13 = inlined_call_operand.hbm [shape: f32[2,8,32], index: 13, kind: output, shape index: {}]
  %s14 = sld [smem:[#allocation0]]
  $region101: #{tpu_custom_call.1} parent=0
    _
  %s16 = ssub.s32 1, %s14
  %s17 = scalar_select 0, %s16, %s14
  $region1: #{tpu_custom_call.1} parent=0
    #allocation4 [shape = 'u8[512]{0}', space=vmem, size = 0x400, scoped, tag = 'input window, operand 7, single buffered']
    #allocation5 [shape = 's32[2]{0}', space=sflag, size = 0x8, scoped, tag = 'scoped memory for tpu_custom_call.1']
    #allocation6 [shape = 's32[2]{0}', space=sflag, size = 0x8, scoped, tag = 'scoped memory for tpu_custom_call.1']
    #allocation7 [shape = 'u8[512]{0}', space=vmem, size = 0x400, scoped, tag = 'input window, operand 8, single buffered']
    #allocation8 [shape = 's32[1]{0}', space=sflag, size = 0x4, scoped, tag = 'scoped memory for tpu_custom_call.1']
    #allocation9 [shape = 'u8[8192]{0}', space=vmem, size = 0x2000, scoped, tag = 'input window, operand 9, single buffered']
    #allocation10 [shape = 'u8[512]{0}', space=vmem, size = 0x400, scoped, tag = 'input window, operand 10, single buffered']
    #allocation11 [shape = 's32[1]{0}', space=sflag, size = 0x4, scoped, tag = 'scoped memory for tpu_custom_call.1']
    #allocation12 [shape = 'u8[8192]{0}', space=vmem, size = 0x2000, scoped, tag = 'output window, operand 0']
    %18 = vsyncpa [#allocation5], 0
    %19 = vsyncpa [#allocation8], 0
    %20 = vsyncpa [#allocation11], 0
    %21 = vsyncpa [#allocation6], 0
    %s22 = scalar_lea.sflag [#allocation6], 1
    %23 = vsyncpa %s22, 0
    loop: start=0, step=1, limit=4
    $region2: #{tpu_custom_call.1} parent=1 // loop_pre_header
      _
    $region3: #{tpu_custom_call.1} parent=1 // loop_header
      %s25 = sphi 0, %s29
      %p26 = scmp.ge.s32.totalorder %s25, 4
      %s35 = sphi 0, %s37
      %s38 = sphi 0, %s35
      %s39 = sphi 0, %s38
      %s55 = sphi 0, %s39
      %s59 = sphi 0, %s59
      %s61 = sphi 0, %s59
      %s62 = sphi 0, %s61
      %s76 = sphi 0, %s62
      %s80 = sphi 0, %s80
      %s82 = sphi 0, %s80
      %s83 = sphi 0, %s82
      %s97 = sphi 0, %s83
      %s101 = sphi 0, %s101
      %s103 = sphi 0, %s101
      %s104 = sphi 0, %s103
      %s118 = sphi 0, %s104
      %s122 = sphi 0, %s122
      %s124 = sphi 0, %s122
      %s125 = sphi 0, %s124
      %s139 = sphi 0, %s125
      %s143 = sphi 0, %s143
      %s145 = sphi 0, %s143
      %s146 = sphi 0, %s145
      %s160 = sphi 0, %s146
      %s164 = sphi 0, %s164
      %s166 = sphi 0, %s164
      %s167 = sphi 0, %s166
      %s181 = sphi 0, %s167
      %s185 = sphi 0, %s185
      %s187 = sphi 0, %s185
      %s188 = sphi 0, %s187
      %s202 = sphi 0, %s188
      %s206 = sphi 0, %s206
      %s208 = sphi 0, %s206
      %s209 = sphi 0, %s208
      %s223 = sphi 0, %s209
      %s227 = sphi 0, %s227
      %s229 = sphi 0, %s227
      %s230 = sphi 0, %s229
      %s244 = sphi 0, %s230
      %s248 = sphi 0, %s248
      %s250 = sphi 0, %s248
      %s251 = sphi 0, %s250
      %s265 = sphi 0, %s251
      %s269 = sphi 0, %s269
      %s271 = sphi 0, %s269
      %s272 = sphi 0, %s271
      %s286 = sphi 0, %s272
      %s290 = sphi 0, %s290
      %s292 = sphi 0, %s290
      %s293 = sphi 0, %s292
      %s307 = sphi 0, %s293
      %s313 = sphi 0, %s315
      %s316 = sphi 0, %s313
      %s317 = sphi 0, %s316
      %s333 = sphi 0, %s317
    $region4: #{tpu_custom_call.1} parent=1 // loop_header_branch
      %28 = sbr.rel (%p26) target = $region8
    $region5: #{tpu_custom_call.1} parent=1 // loop_body
      %s30 = ssub.s32 %s25, 1
      %s31 = ssub.s32 %s25, 2
      %s32 = sadd.s32 %s25, 1
      %s33 = ssub.s32 %s25, %s32
      %p34 = scmp.eq.s32.totalorder %s33, 0
      %s36 = sadd.s32 %s35, 1
      %s37 = scalar_select %p34, %s35, %s36
      %p40 = pneg %p34
      %p41 = scmp.eq.s32.totalorder %s25, 1
      %p42 = por %p40, %p41
      %p43 = scmp.ne.s32.totalorder %s35, %s38
      %p44 = scmp.eq.s32.totalorder %s25, 0
      %p45 = por %p43, %p44
      %p46 = scmp.ne.s32.totalorder %s35, %s38
      %p47 = scmp.eq.s32.totalorder %s30, 1
      %p48 = por %p46, %p47
      %p49 = scmp.ne.s32.totalorder %s38, %s39
      %p50 = scmp.eq.s32.totalorder %s30, 0
      %p51 = por %p49, %p50
      %p52 = scmp.ne.s32.totalorder %s38, %s39
      %p53 = scmp.eq.s32.totalorder %s31, 1
      %p54 = por %p52, %p53
      %p56 = scmp.ne.s32.totalorder %s39, %s55
      %p57 = scmp.eq.s32.totalorder %s31, 0
      %p58 = por %p56, %p57
      %s60 = sadd.s32 %s59, 1
      %p63 = scmp.eq.s32.totalorder %s25, 1
      %p64 = scmp.ne.s32.totalorder %s59, %s61
      %p65 = scmp.eq.s32.totalorder %s25, 0
      %p66 = por %p64, %p65
      %p67 = scmp.ne.s32.totalorder %s59, %s61
      %p68 = scmp.eq.s32.totalorder %s30, 1
      %p69 = por %p67, %p68
      %p70 = scmp.ne.s32.totalorder %s61, %s62
      %p71 = scmp.eq.s32.totalorder %s30, 0
      %p72 = por %p70, %p71
      %p73 = scmp.ne.s32.totalorder %s61, %s62
      %p74 = scmp.eq.s32.totalorder %s31, 1
      %p75 = por %p73, %p74
      %p77 = scmp.ne.s32.totalorder %s62, %s76
      %p78 = scmp.eq.s32.totalorder %s31, 0
      %p79 = por %p77, %p78
      %s81 = sadd.s32 %s80, 1
      %p84 = scmp.eq.s32.totalorder %s25, 1
      %p85 = scmp.ne.s32.totalorder %s80, %s82
      %p86 = scmp.eq.s32.totalorder %s25, 0
      %p87 = por %p85, %p86
      %p88 = scmp.ne.s32.totalorder %s80, %s82
      %p89 = scmp.eq.s32.totalorder %s30, 1
      %p90 = por %p88, %p89
      %p91 = scmp.ne.s32.totalorder %s82, %s83
      %p92 = scmp.eq.s32.totalorder %s30, 0
      %p93 = por %p91, %p92
      %p94 = scmp.ne.s32.totalorder %s82, %s83
      %p95 = scmp.eq.s32.totalorder %s31, 1
      %p96 = por %p94, %p95
      %p98 = scmp.ne.s32.totalorder %s83, %s97
      %p99 = scmp.eq.s32.totalorder %s31, 0
      %p100 = por %p98, %p99
      %s102 = sadd.s32 %s101, 1
      %p105 = scmp.eq.s32.totalorder %s25, 1
      %p106 = scmp.ne.s32.totalorder %s101, %s103
      %p107 = scmp.eq.s32.totalorder %s25, 0
      %p108 = por %p106, %p107
      %p109 = scmp.ne.s32.totalorder %s101, %s103
      %p110 = scmp.eq.s32.totalorder %s30, 1
      %p111 = por %p109, %p110
      %p112 = scmp.ne.s32.totalorder %s103, %s104
      %p113 = scmp.eq.s32.totalorder %s30, 0
      %p114 = por %p112, %p113
      %p115 = scmp.ne.s32.totalorder %s103, %s104
      %p116 = scmp.eq.s32.totalorder %s31, 1
      %p117 = por %p115, %p116
      %p119 = scmp.ne.s32.totalorder %s104, %s118
      %p120 = scmp.eq.s32.totalorder %s31, 0
      %p121 = por %p119, %p120
      %s123 = sadd.s32 %s122, 1
      %p126 = scmp.eq.s32.totalorder %s25, 1
      %p127 = scmp.ne.s32.totalorder %s122, %s124
      %p128 = scmp.eq.s32.totalorder %s25, 0
      %p129 = por %p127, %p128
      %p130 = scmp.ne.s32.totalorder %s122, %s124
      %p131 = scmp.eq.s32.totalorder %s30, 1
      %p132 = por %p130, %p131
      %p133 = scmp.ne.s32.totalorder %s124, %s125
      %p134 = scmp.eq.s32.totalorder %s30, 0
      %p135 = por %p133, %p134
      %p136 = scmp.ne.s32.totalorder %s124, %s125
      %p137 = scmp.eq.s32.totalorder %s31, 1
      %p138 = por %p136, %p137
      %p140 = scmp.ne.s32.totalorder %s125, %s139
      %p141 = scmp.eq.s32.totalorder %s31, 0
      %p142 = por %p140, %p141
      %s144 = sadd.s32 %s143, 1
      %p147 = scmp.eq.s32.totalorder %s25, 1
      %p148 = scmp.ne.s32.totalorder %s143, %s145
      %p149 = scmp.eq.s32.totalorder %s25, 0
      %p150 = por %p148, %p149
      %p151 = scmp.ne.s32.totalorder %s143, %s145
      %p152 = scmp.eq.s32.totalorder %s30, 1
      %p153 = por %p151, %p152
      %p154 = scmp.ne.s32.totalorder %s145, %s146
      %p155 = scmp.eq.s32.totalorder %s30, 0
      %p156 = por %p154, %p155
      %p157 = scmp.ne.s32.totalorder %s145, %s146
      %p158 = scmp.eq.s32.totalorder %s31, 1
      %p159 = por %p157, %p158
      %p161 = scmp.ne.s32.totalorder %s146, %s160
      %p162 = scmp.eq.s32.totalorder %s31, 0
      %p163 = por %p161, %p162
      %s165 = sadd.s32 %s164, 1
      %p168 = scmp.eq.s32.totalorder %s25, 1
      %p169 = scmp.ne.s32.totalorder %s164, %s166
      %p170 = scmp.eq.s32.totalorder %s25, 0
      %p171 = por %p169, %p170
      %p172 = scmp.ne.s32.totalorder %s164, %s166
      %p173 = scmp.eq.s32.totalorder %s30, 1
      %p174 = por %p172, %p173
      %p175 = scmp.ne.s32.totalorder %s166, %s167
      %p176 = scmp.eq.s32.totalorder %s30, 0
      %p177 = por %p175, %p176
      %p178 = scmp.ne.s32.totalorder %s166, %s167
      %p179 = scmp.eq.s32.totalorder %s31, 1
      %p180 = por %p178, %p179
      %p182 = scmp.ne.s32.totalorder %s167, %s181
      %p183 = scmp.eq.s32.totalorder %s31, 0
      %p184 = por %p182, %p183
      %s186 = sadd.s32 %s185, 1
      %p189 = scmp.eq.s32.totalorder %s25, 1
      %p190 = scmp.ne.s32.totalorder %s185, %s187
      %p191 = scmp.eq.s32.totalorder %s25, 0
      %p192 = por %p190, %p191
      %p193 = scmp.ne.s32.totalorder %s185, %s187
      %p194 = scmp.eq.s32.totalorder %s30, 1
      %p195 = por %p193, %p194
      %p196 = scmp.ne.s32.totalorder %s187, %s188
      %p197 = scmp.eq.s32.totalorder %s30, 0
      %p198 = por %p196, %p197
      %p199 = scmp.ne.s32.totalorder %s187, %s188
      %p200 = scmp.eq.s32.totalorder %s31, 1
      %p201 = por %p199, %p200
      %p203 = scmp.ne.s32.totalorder %s188, %s202
      %p204 = scmp.eq.s32.totalorder %s31, 0
      %p205 = por %p203, %p204
      %s207 = sadd.s32 %s206, 1
      %p210 = scmp.eq.s32.totalorder %s25, 1
      %p211 = scmp.ne.s32.totalorder %s206, %s208
      %p212 = scmp.eq.s32.totalorder %s25, 0
      %p213 = por %p211, %p212
      %p214 = scmp.ne.s32.totalorder %s206, %s208
      %p215 = scmp.eq.s32.totalorder %s30, 1
      %p216 = por %p214, %p215
      %p217 = scmp.ne.s32.totalorder %s208, %s209
      %p218 = scmp.eq.s32.totalorder %s30, 0
      %p219 = por %p217, %p218
      %p220 = scmp.ne.s32.totalorder %s208, %s209
      %p221 = scmp.eq.s32.totalorder %s31, 1
      %p222 = por %p220, %p221
      %p224 = scmp.ne.s32.totalorder %s209, %s223
      %p225 = scmp.eq.s32.totalorder %s31, 0
      %p226 = por %p224, %p225
      %s228 = sadd.s32 %s227, 1
      %p231 = scmp.eq.s32.totalorder %s25, 1
      %p232 = scmp.ne.s32.totalorder %s227, %s229
      %p233 = scmp.eq.s32.totalorder %s25, 0
      %p234 = por %p232, %p233
      %p235 = scmp.ne.s32.totalorder %s227, %s229
      %p236 = scmp.eq.s32.totalorder %s30, 1
      %p237 = por %p235, %p236
      %p238 = scmp.ne.s32.totalorder %s229, %s230
      %p239 = scmp.eq.s32.totalorder %s30, 0
      %p240 = por %p238, %p239
      %p241 = scmp.ne.s32.totalorder %s229, %s230
      %p242 = scmp.eq.s32.totalorder %s31, 1
      %p243 = por %p241, %p242
      %p245 = scmp.ne.s32.totalorder %s230, %s244
      %p246 = scmp.eq.s32.totalorder %s31, 0
      %p247 = por %p245, %p246
      %s249 = sadd.s32 %s248, 1
      %p252 = scmp.eq.s32.totalorder %s25, 1
      %p253 = scmp.ne.s32.totalorder %s248, %s250
      %p254 = scmp.eq.s32.totalorder %s25, 0
      %p255 = por %p253, %p254
      %p256 = scmp.ne.s32.totalorder %s248, %s250
      %p257 = scmp.eq.s32.totalorder %s30, 1
      %p258 = por %p256, %p257
      %p259 = scmp.ne.s32.totalorder %s250, %s251
      %p260 = scmp.eq.s32.totalorder %s30, 0
      %p261 = por %p259, %p260
      %p262 = scmp.ne.s32.totalorder %s250, %s251
      %p263 = scmp.eq.s32.totalorder %s31, 1
      %p264 = por %p262, %p263
      %p266 = scmp.ne.s32.totalorder %s251, %s265
      %p267 = scmp.eq.s32.totalorder %s31, 0
      %p268 = por %p266, %p267
      %s270 = sadd.s32 %s269, 1
      %p273 = scmp.eq.s32.totalorder %s25, 1
      %p274 = scmp.ne.s32.totalorder %s269, %s271
      %p275 = scmp.eq.s32.totalorder %s25, 0
      %p276 = por %p274, %p275
      %p277 = scmp.ne.s32.totalorder %s269, %s271
      %p278 = scmp.eq.s32.totalorder %s30, 1
      %p279 = por %p277, %p278
      %p280 = scmp.ne.s32.totalorder %s271, %s272
      %p281 = scmp.eq.s32.totalorder %s30, 0
      %p282 = por %p280, %p281
      %p283 = scmp.ne.s32.totalorder %s271, %s272
      %p284 = scmp.eq.s32.totalorder %s31, 1
      %p285 = por %p283, %p284
      %p287 = scmp.ne.s32.totalorder %s272, %s286
      %p288 = scmp.eq.s32.totalorder %s31, 0
      %p289 = por %p287, %p288
      %s291 = sadd.s32 %s290, 1
      %p294 = scmp.eq.s32.totalorder %s25, 1
      %p295 = scmp.ne.s32.totalorder %s290, %s292
      %p296 = scmp.eq.s32.totalorder %s25, 0
      %p297 = por %p295, %p296
      %p298 = scmp.ne.s32.totalorder %s290, %s292
      %p299 = scmp.eq.s32.totalorder %s30, 1
      %p300 = por %p298, %p299
      %p301 = scmp.ne.s32.totalorder %s292, %s293
      %p302 = scmp.eq.s32.totalorder %s30, 0
      %p303 = por %p301, %p302
      %p304 = scmp.ne.s32.totalorder %s292, %s293
      %p305 = scmp.eq.s32.totalorder %s31, 1
      %p306 = por %p304, %p305
      %p308 = scmp.ne.s32.totalorder %s293, %s307
      %p309 = scmp.eq.s32.totalorder %s31, 0
      %p310 = por %p308, %p309
      %s311 = ssub.s32 %s25, %s32
      %p312 = scmp.eq.s32.totalorder %s311, 0
      %s314 = sadd.s32 %s313, 1
      %s315 = scalar_select %p312, %s313, %s314
      %p318 = pneg %p312
      %p319 = scmp.eq.s32.totalorder %s25, 1
      %p320 = por %p318, %p319
      %p321 = scmp.ne.s32.totalorder %s313, %s316
      %p322 = scmp.eq.s32.totalorder %s25, 0
      %p323 = por %p321, %p322
      %p324 = scmp.ne.s32.totalorder %s313, %s316
      %p325 = scmp.eq.s32.totalorder %s30, 1
      %p326 = por %p324, %p325
      %p327 = scmp.ne.s32.totalorder %s316, %s317
      %p328 = scmp.eq.s32.totalorder %s30, 0
      %p329 = por %p327, %p328
      %p330 = scmp.ne.s32.totalorder %s316, %s317
      %p331 = scmp.eq.s32.totalorder %s31, 1
      %p332 = por %p330, %p331
      %p334 = scmp.ne.s32.totalorder %s317, %s333
      %p335 = scmp.eq.s32.totalorder %s31, 0
      %p336 = por %p334, %p335
      %p337 = scmp.le.s32.totalorder 1, %s25
      %p338 = scmp.lt.s32.totalorder %s25, 3
      %p339 = pnand %p337, %p338
      %p340 = pneg %p339
      // Predicated region
      $region9: #{tpu_custom_call.1} parent=5 // pred_check
        _
      $region10: #{tpu_custom_call.1} parent=5 // pred_check_branch
        %342 = sbr.rel (%p339) target = $region12
      $region11: #{tpu_custom_call.1} parent=5 // pred_region
        %s343 = ssub.s32 %s25, 1
        // Predicated region
        $region13: #{tpu_custom_call.1} parent=11 // pred_check
          %p344 = pneg %p72
        $region14: #{tpu_custom_call.1} parent=11 // pred_check_branch
          %346 = sbr.rel (%p344) target = $region16
        $region15: #{tpu_custom_call.1} parent=11 // pred_region
          _
        $region16: #{tpu_custom_call.1} parent=11 // pred_fallthru
          _
        // Predicated region
        $region17: #{tpu_custom_call.1} parent=11 // pred_check
          %p347 = pneg %p93
        $region18: #{tpu_custom_call.1} parent=11 // pred_check_branch
          %349 = sbr.rel (%p347) target = $region20
        $region19: #{tpu_custom_call.1} parent=11 // pred_region
          _
        $region20: #{tpu_custom_call.1} parent=11 // pred_fallthru
          _
        // Predicated region
        $region21: #{tpu_custom_call.1} parent=11 // pred_check
          %p350 = pneg %p114
        $region22: #{tpu_custom_call.1} parent=11 // pred_check_branch
          %352 = sbr.rel (%p350) target = $region24
        $region23: #{tpu_custom_call.1} parent=11 // pred_region
          _
        $region24: #{tpu_custom_call.1} parent=11 // pred_fallthru
          _
        // Predicated region
        $region25: #{tpu_custom_call.1} parent=11 // pred_check
          %p353 = pneg %p135
        $region26: #{tpu_custom_call.1} parent=11 // pred_check_branch
          %355 = sbr.rel (%p353) target = $region28
        $region27: #{tpu_custom_call.1} parent=11 // pred_region
          _
        $region28: #{tpu_custom_call.1} parent=11 // pred_fallthru
          _
        // Predicated region
        $region29: #{tpu_custom_call.1} parent=11 // pred_check
          %p356 = pneg %p156
        $region30: #{tpu_custom_call.1} parent=11 // pred_check_branch
          %358 = sbr.rel (%p356) target = $region32
        $region31: #{tpu_custom_call.1} parent=11 // pred_region
          _
        $region32: #{tpu_custom_call.1} parent=11 // pred_fallthru
          _
        // Predicated region
        $region33: #{tpu_custom_call.1} parent=11 // pred_check
          %p359 = pneg %p177
        $region34: #{tpu_custom_call.1} parent=11 // pred_check_branch
          %361 = sbr.rel (%p359) target = $region36
        $region35: #{tpu_custom_call.1} parent=11 // pred_region
          _
        $region36: #{tpu_custom_call.1} parent=11 // pred_fallthru
          _
        // Predicated region
        $region37: #{tpu_custom_call.1} parent=11 // pred_check
          %p362 = pneg %p198
        $region38: #{tpu_custom_call.1} parent=11 // pred_check_branch
          %364 = sbr.rel (%p362) target = $region40
        $region39: #{tpu_custom_call.1} parent=11 // pred_region
          %s366 = ssub.s32 16, 16
          %367 = vsyncadd [#allocation5], %s366
          %s369 = sshll.u32 [#allocation4], 4
          %s370 = int_to_ptr.vmem [resolvable:$true] %s369
          %372 = dma.hbm_to_vmem [thread:$0]  %s7, 16, %s370, [#allocation5]
        $region40: #{tpu_custom_call.1} parent=11 // pred_fallthru
          _
        // Predicated region
        $region41: #{tpu_custom_call.1} parent=11 // pred_check
          %p373 = pneg %p219
        $region42: #{tpu_custom_call.1} parent=11 // pred_check_branch
          %375 = sbr.rel (%p373) target = $region44
        $region43: #{tpu_custom_call.1} parent=11 // pred_region
          %s377 = ssub.s32 16, 16
          %378 = vsyncadd [#allocation8], %s377
          %s380 = sshll.u32 [#allocation7], 4
          %s381 = int_to_ptr.vmem [resolvable:$true] %s380
          %383 = dma.hbm_to_vmem [thread:$0]  %s8, 16, %s381, [#allocation8]
        $region44: #{tpu_custom_call.1} parent=11 // pred_fallthru
          _
        // Predicated region
        $region45: #{tpu_custom_call.1} parent=11 // pred_check
          %p384 = pneg %p240
        $region46: #{tpu_custom_call.1} parent=11 // pred_check_branch
          %386 = sbr.rel (%p384) target = $region48
        $region47: #{tpu_custom_call.1} parent=11 // pred_region
          %s388 = ssub.s32 256, 256
          %389 = vsyncadd [#allocation8], %s388
          %s390 = sshll.u32 [#allocation9], 4
          %s391 = int_to_ptr.vmem [resolvable:$true] %s390
          %396 = dma.hbm_to_vmem [thread:$0]  %s9, 256, %s391, [#allocation8], 64, 64, 4
        $region48: #{tpu_custom_call.1} parent=11 // pred_fallthru
          _
        // Predicated region
        $region49: #{tpu_custom_call.1} parent=11 // pred_check
          %p397 = pneg %p261
        $region50: #{tpu_custom_call.1} parent=11 // pred_check_branch
          %399 = sbr.rel (%p397) target = $region52
        $region51: #{tpu_custom_call.1} parent=11 // pred_region
          %s401 = ssub.s32 16, 16
          %402 = vsyncadd [#allocation11], %s401
          %s404 = sshll.u32 [#allocation10], 4
          %s405 = int_to_ptr.vmem [resolvable:$true] %s404
          %407 = dma.hbm_to_vmem [thread:$0]  %s10, 16, %s405, [#allocation11]
        $region52: #{tpu_custom_call.1} parent=11 // pred_fallthru
          _
        // Predicated region
        $region53: #{tpu_custom_call.1} parent=11 // pred_check
          %p408 = pneg %p282
        $region54: #{tpu_custom_call.1} parent=11 // pred_check_branch
          %410 = sbr.rel (%p408) target = $region56
        $region55: #{tpu_custom_call.1} parent=11 // pred_region
          _
        $region56: #{tpu_custom_call.1} parent=11 // pred_fallthru
          _
        // Predicated region
        $region57: #{tpu_custom_call.1} parent=11 // pred_check
          %p411 = pneg %p303
        $region58: #{tpu_custom_call.1} parent=11 // pred_check_branch
          %413 = sbr.rel (%p411) target = $region60
        $region59: #{tpu_custom_call.1} parent=11 // pred_region
          _
        $region60: #{tpu_custom_call.1} parent=11 // pred_fallthru
          _
      $region12: #{tpu_custom_call.1} parent=5 // pred_fallthru
        _
      %p414 = scmp.lt.s32.totalorder %s25, 2
      // Predicated region
      $region61: #{tpu_custom_call.1} parent=5 // pred_check
        %p415 = pneg %p414
      $region62: #{tpu_custom_call.1} parent=5 // pred_check_branch
        %417 = sbr.rel (%p415) target = $region64
      $region63: #{tpu_custom_call.1} parent=5 // pred_region
        // Predicated region
        $region65: #{tpu_custom_call.1} parent=63 // pred_check
          %p418 = pneg %p45
        $region66: #{tpu_custom_call.1} parent=63 // pred_check_branch
          %420 = sbr.rel (%p418) target = $region68
        $region67: #{tpu_custom_call.1} parent=63 // pred_region
          %p421 = scmp.lt.s32.totalorder %s25, 1
          %s422 = scalar_select %p421, %s25, 1
          %s423 = smul.addr %s422, 8
          %s424 = scalar_lea.vmem %s0, %s423
        $region68: #{tpu_custom_call.1} parent=63 // pred_fallthru
          _
      $region64: #{tpu_custom_call.1} parent=5 // pred_fallthru
        _
      %p425 = scmp.le.s32.totalorder 1, %s25
      %p426 = scmp.lt.s32.totalorder %s25, 3
      %p427 = pnand %p425, %p426
      %p428 = pneg %p427
      // Predicated region
      $region69: #{tpu_custom_call.1} parent=5 // pred_check
        _
      $region70: #{tpu_custom_call.1} parent=5 // pred_check_branch
        %430 = sbr.rel (%p427) target = $region72
      $region71: #{tpu_custom_call.1} parent=5 // pred_region
        %s431 = ssub.s32 %s25, 1
        // Predicated region
        $region73: #{tpu_custom_call.1} parent=71 // pred_check
          %p432 = pneg %p198
        $region74: #{tpu_custom_call.1} parent=71 // pred_check_branch
          %434 = sbr.rel (%p432) target = $region76
        $region75: #{tpu_custom_call.1} parent=71 // pred_region
          %435 = dma.done [#allocation5], 16
        $region76: #{tpu_custom_call.1} parent=71 // pred_fallthru
          _
        // Predicated region
        $region77: #{tpu_custom_call.1} parent=71 // pred_check
          %p436 = pneg %p219
        $region78: #{tpu_custom_call.1} parent=71 // pred_check_branch
          %438 = sbr.rel (%p436) target = $region80
        $region79: #{tpu_custom_call.1} parent=71 // pred_region
          %439 = dma.done [#allocation8], 16
        $region80: #{tpu_custom_call.1} parent=71 // pred_fallthru
          _
        // Predicated region
        $region81: #{tpu_custom_call.1} parent=71 // pred_check
          %p440 = pneg %p240
        $region82: #{tpu_custom_call.1} parent=71 // pred_check_branch
          %442 = sbr.rel (%p440) target = $region84
        $region83: #{tpu_custom_call.1} parent=71 // pred_region
          %443 = dma.done [#allocation8], 256
        $region84: #{tpu_custom_call.1} parent=71 // pred_fallthru
          _
        // Predicated region
        $region85: #{tpu_custom_call.1} parent=71 // pred_check
          %p444 = pneg %p261
        $region86: #{tpu_custom_call.1} parent=71 // pred_check_branch
          %446 = sbr.rel (%p444) target = $region88
        $region87: #{tpu_custom_call.1} parent=71 // pred_region
          %447 = dma.done [#allocation11], 16
        $region88: #{tpu_custom_call.1} parent=71 // pred_fallthru
          _
        %p448 = scmp.lt.s32.totalorder %s30, 1
        %s449 = scalar_select %p448, %s30, 1
        %s450 = smul.addr %s449, 8
        %s451 = scalar_lea.vmem %s0, %s450
        %p452 = pneg %p51
        %p453 = pneg %p48
        %p454 = pneg %p72
        %p455 = pneg %p69
        %p456 = pneg %p93
        %p457 = pneg %p90
        %p458 = pneg %p114
        %p459 = pneg %p111
        %p460 = pneg %p135
        %p461 = pneg %p132
        %p462 = pneg %p156
        %p463 = pneg %p153
        %p464 = pneg %p177
        %p465 = pneg %p174
        %p466 = pneg %p198
        %p467 = pneg %p195
        %p468 = pneg %p219
        %p469 = pneg %p216
        %p470 = pneg %p240
        %p471 = pneg %p237
        %p472 = pneg %p261
        %p473 = pneg %p258
        %p474 = pneg %p282
        %p475 = pneg %p279
        %p476 = pneg %p303
        %p477 = pneg %p300
        %p478 = pneg %p329
        %p479 = pneg %p326
        %s480 = sand.u32 %s316, 1
        %s481 = scalar_lea.sflag [#allocation6], %s480
        %s482 = sand.u32 %s316, 1
        %s483 = smul.addr %s482, 8
        %s484 = scalar_lea.vmem [#allocation12], %s483
        %p485 = scmp.lt.s32.totalorder %s30, 1
        %s486 = scalar_select %p485, %s30, 1
        %s487 = smul.addr %s486, 8
        %s488 = scalar_lea.vmem %s0, %s487
        %v490 = vld [vmem:[%s488] sm:$0xff]
        %v491 = vld [vmem:[%s1] sm:$0x1]
        %v492 = vld [vmem:[%s2] sm:$0x1]
        %vm493 = vcmask 261120
        %v494 = vsel %vm493, %v490, 0.0
        %495 = vadd.xlane.f32.xlu0 %v494
        %v496 = vpop.xlane.xlu0 %495
        %v497 = vrcp.pop 32.0
        %v498 = vmul.f32 %v496, %v497
        %v499 = vsub.f32 %v490, %v498
        %v500 = vmul.f32 %v499, %v499
        %v501 = vsel %vm493, %v500, 0.0
        %502 = vadd.xlane.f32.xlu0 %v501
        %v503 = vpop.xlane.xlu0 %502
        %v504 = vmul.f32 %v503, %v497
        %v505 = vadd.f32 %v504, 1e-06
        %v506 = vrsqrt.pop %v505
        %v507 = vmul.f32 %v499, %v506
        %v509 = vlaneseq
        %v510 = vshrl.u32 %v509, 7
        %v511 = vsub.s32 0, %v510
        %v512 = vrot.slane %v491, %v511
        %v514 = vmul.f32 %v507, %v512
        %v516 = vlaneseq
        %v517 = vshrl.u32 %v516, 7
        %v518 = vsub.s32 0, %v517
        %v519 = vrot.slane %v492, %v518
        %v521 = vadd.f32 %v514, %v519
        %v522 = vpack.c.bf16 %v521, %v521
        %v523 = vld [vmem:[%s3] sm:$0xf]
        %v524 = vld [vmem:[%s3 + $0x4] sm:$0xf]
        %v525 = vld [vmem:[%s3 + $0x8] sm:$0xf]
        %v526 = vld [vmem:[%s3 + $0xc] sm:$0xf]
        %v527 = vld [vmem:[%s4] sm:$0x1]
        %v529 = vlaneseq
        %v530 = vshrl.u32 %v529, 7
        %v531 = vsub.s32 0, %v530
        %v532 = vrot.slane %v527, %v531
        %v538 = vunpack.c.l.b16 %v523
        %v539 = vunpack.c.l.b16 %v524
        %v540 = vunpack.c.l.b16 %v525
        %v541 = vunpack.c.l.b16 %v526
        %v542 = vpack.c.b16 %v539, %v538
        %v543 = vpack.c.b16 %v541, %v540
        %v547 = vsel %vm493, %v522, 0
        %549 = vmatprep.subr.bf16.mxu0 0
        %550 = vmatpush1.bf16.msra.mxu0 0
        %551 = vmatprep.subr.bf16.mxu0 0
        %552 = vmatpush1.bf16.msra.mxu0 0
        %553 = vmatprep.subr.bf16.mxu0 0
        %554 = vmatpush1.bf16.msra.mxu0 0
        %555 = vmatprep.subr.bf16.mxu0 0
        %556 = vmatpush1.bf16.msra.mxu0 0
        %557 = vmatprep.subr.bf16.mxu0 0
        %558 = vmatpush1.bf16.msra.mxu0 0
        %559 = vmatprep.subr.bf16.mxu0 0
        %560 = vmatpush1.bf16.msra.mxu0 0
        %561 = vmatprep.subr.bf16.mxu0 0
        %562 = vmatpush1.bf16.msra.mxu0 %v543
        %563 = vmatprep.subr.bf16.mxu0 0
        %564 = vmatpush1.bf16.msra.mxu0 %v542
        %565 = vmatprep.subr.bf16.mxu0 0
        %566 = vmatpush2.bf16.msra.mxu0 0
        %567 = vmatprep.subr.bf16.mxu0 0
        %568 = vmatpush2.bf16.msra.mxu0 0
        %569 = vmatprep.subr.bf16.mxu0 0
        %570 = vmatpush2.bf16.msra.mxu0 0
        %571 = vmatprep.subr.bf16.mxu0 0
        %572 = vmatpush2.bf16.msra.mxu0 0
        %573 = vmatprep.subr.bf16.mxu0 0
        %574 = vmatpush2.bf16.msra.mxu0 0
        %575 = vmatprep.subr.bf16.mxu0 0
        %576 = vmatpush2.bf16.msra.mxu0 0
        %577 = vmatprep.subr.bf16.mxu0 0
        %578 = vmatpush2.bf16.msra.mxu0 0
        %579 = vmatprep.subr.bf16.mxu0 0
        %580 = vmatpush2.bf16.msra.mxu0 0
        %581 = vmatprep.mubr.bf16.mxu0 0
        %582 = vmatmul.mubr.bf16.gmra.mxu0 %v547
        %v583 = vpop.f32.mrf.mxu0
        %v584 = vadd.f32 %v532, %v583
        %v585 = vpop.f32.mrf.mxu0
        %v586 = vpop.f32.mrf.mxu0
        %v587 = vpop.f32.mrf.mxu0
        %588 = vdwg.mxu0
        %v589 = vpack.c.bf16 %v584, %v584
        %vm590 = vcmask 781312
        %591 = vst.msk [vmem:[#allocation2] sm:$0xf] %vm590, %v589
        %v592 = vld [vmem:[#allocation2] sm:$0xf]
        %v594 = vunpack.c.l.b16 %v592
        %v595 = vpack.c.b16 %v594, %v594
        %596 = vrot.lane.b32.xlu0 %v595, 96
        %v597 = vpop.permute.xlu0 %596
        %vm598 = vcmask 64512
        %v600 = vsel %vm598, %v592, 0
        %v603 = vsel %vm598, %v597, 0
        %605 = vmatprep.subr.bf16.mxu0 0
        %606 = vmatpush1.bf16.xpose.msra.mxu0 0
        %607 = vmatprep.subr.bf16.mxu0 0
        %608 = vmatpush1.bf16.xpose.msra.mxu0 0
        %609 = vmatprep.subr.bf16.mxu0 0
        %610 = vmatpush1.bf16.xpose.msra.mxu0 0
        %611 = vmatprep.subr.bf16.mxu0 0
        %612 = vmatpush1.bf16.xpose.msra.mxu0 0
        %613 = vmatprep.subr.bf16.mxu0 0
        %614 = vmatpush1.bf16.xpose.msra.mxu0 0
        %615 = vmatprep.subr.bf16.mxu0 0
        %616 = vmatpush1.bf16.xpose.msra.mxu0 0
        %617 = vmatprep.subr.bf16.mxu0 0
        %618 = vmatpush1.bf16.xpose.msra.mxu0 0
        %619 = vmatprep.subr.bf16.mxu0 0
        %620 = vmatpush1.bf16.xpose.msra.mxu0 %v603
        %621 = vmatprep.subr.bf16.mxu0 0
        %622 = vmatpush2.bf16.xpose.msra.mxu0 0
        %623 = vmatprep.subr.bf16.mxu0 0
        %624 = vmatpush2.bf16.xpose.msra.mxu0 0
        %625 = vmatprep.subr.bf16.mxu0 0
        %626 = vmatpush2.bf16.xpose.msra.mxu0 0
        %627 = vmatprep.subr.bf16.mxu0 0
        %628 = vmatpush2.bf16.xpose.msra.mxu0 0
        %629 = vmatprep.subr.bf16.mxu0 0
        %630 = vmatpush2.bf16.xpose.msra.mxu0 0
        %631 = vmatprep.subr.bf16.mxu0 0
        %632 = vmatpush2.bf16.xpose.msra.mxu0 0
        %633 = vmatprep.subr.bf16.mxu0 0
        %634 = vmatpush2.bf16.xpose.msra.mxu0 0
        %635 = vmatprep.subr.bf16.mxu0 0
        %636 = vmatpush2.bf16.xpose.msra.mxu0 0
        %637 = vmatprep.mubr.bf16.mxu0 0
        %638 = vmatmul.mubr.bf16.gmra.mxu0 %v600
        %v639 = vpop.f32.mrf.mxu0
        %v640 = vadd.f32 0.0, %v639
        %v641 = vpop.f32.mrf.mxu0
        %v642 = vpop.f32.mrf.mxu0
        %v643 = vpop.f32.mrf.mxu0
        %644 = vdwg.mxu0
        %v645 = vsel %vm598, %v640, -inf
        %646 = vmax.xlane.f32.xlu0 %v645
        %v647 = vpop.xlane.xlu0 %646
        %v648 = vsub.f32 %v640, %v647
        %v649 = vmul.f32 %v648, 1.442695
        %v650 = vpow.pop %v649
        %v651 = vsel %vm598, %v650, 0.0
        %652 = vadd.xlane.f32.xlu0 %v651
        %v653 = vpop.xlane.xlu0 %652
        %v654 = vrcp.pop %v653
        %v655 = vmul.f32 %v650, %v654
        %v656 = vpack.c.bf16 %v655, %v655
        %657 = vrot.lane.b32.xlu0 %v595, 64
        %v658 = vpop.permute.xlu0 %657
        %v660 = vsel %vm598, %v656, 0
        %vm662 = vcmask 1043456
        %v664 = vsel %vm662, %v658, 0
        %666 = vmatprep.subr.bf16.mxu0 0
        %667 = vmatpush1.bf16.msra.mxu0 0
        %668 = vmatprep.subr.bf16.mxu0 0
        %669 = vmatpush1.bf16.msra.mxu0 0
        %670 = vmatprep.subr.bf16.mxu0 0
        %671 = vmatpush1.bf16.msra.mxu0 0
        %672 = vmatprep.subr.bf16.mxu0 0
        %673 = vmatpush1.bf16.msra.mxu0 0
        %674 = vmatprep.subr.bf16.mxu0 0
        %675 = vmatpush1.bf16.msra.mxu0 0
        %676 = vmatprep.subr.bf16.mxu0 0
        %677 = vmatpush1.bf16.msra.mxu0 0
        %678 = vmatprep.subr.bf16.mxu0 0
        %679 = vmatpush1.bf16.msra.mxu0 0
        %680 = vmatprep.subr.bf16.mxu0 0
        %681 = vmatpush1.bf16.msra.mxu0 %v664
        %682 = vmatprep.subr.bf16.mxu0 0
        %683 = vmatpush2.bf16.msra.mxu0 0
        %684 = vmatprep.subr.bf16.mxu0 0
        %685 = vmatpush2.bf16.msra.mxu0 0
        %686 = vmatprep.subr.bf16.mxu0 0
        %687 = vmatpush2.bf16.msra.mxu0 0
        %688 = vmatprep.subr.bf16.mxu0 0
        %689 = vmatpush2.bf16.msra.mxu0 0
        %690 = vmatprep.subr.bf16.mxu0 0
        %691 = vmatpush2.bf16.msra.mxu0 0
        %692 = vmatprep.subr.bf16.mxu0 0
        %693 = vmatpush2.bf16.msra.mxu0 0
        %694 = vmatprep.subr.bf16.mxu0 0
        %695 = vmatpush2.bf16.msra.mxu0 0
        %696 = vmatprep.subr.bf16.mxu0 0
        %697 = vmatpush2.bf16.msra.mxu0 0
        %698 = vmatprep.mubr.bf16.mxu0 0
        %699 = vmatmul.mubr.bf16.gmra.mxu0 %v660
        %v700 = vpop.f32.mrf.mxu0
        %v701 = vadd.f32 0.0, %v700
        %v702 = vpop.f32.mrf.mxu0
        %v703 = vpop.f32.mrf.mxu0
        %v704 = vpop.f32.mrf.mxu0
        %705 = vdwg.mxu0
        %706 = vrot.lane.b32.xlu0 %v595, 120
        %v707 = vpop.permute.xlu0 %706
        %708 = vrot.lane.b32.xlu0 %v595, 88
        %v709 = vpop.permute.xlu0 %708
        %v711 = vsel %vm598, %v707, 0
        %v714 = vsel %vm598, %v709, 0
        %716 = vmatprep.subr.bf16.mxu0 0
        %717 = vmatpush1.bf16.xpose.msra.mxu0 0
        %718 = vmatprep.subr.bf16.mxu0 0
        %719 = vmatpush1.bf16.xpose.msra.mxu0 0
        %720 = vmatprep.subr.bf16.mxu0 0
        %721 = vmatpush1.bf16.xpose.msra.mxu0 0
        %722 = vmatprep.subr.bf16.mxu0 0
        %723 = vmatpush1.bf16.xpose.msra.mxu0 0
        %724 = vmatprep.subr.bf16.mxu0 0
        %725 = vmatpush1.bf16.xpose.msra.mxu0 0
        %726 = vmatprep.subr.bf16.mxu0 0
        %727 = vmatpush1.bf16.xpose.msra.mxu0 0
        %728 = vmatprep.subr.bf16.mxu0 0
        %729 = vmatpush1.bf16.xpose.msra.mxu0 0
        %730 = vmatprep.subr.bf16.mxu0 0
        %731 = vmatpush1.bf16.xpose.msra.mxu0 %v714
        %732 = vmatprep.subr.bf16.mxu0 0
        %733 = vmatpush2.bf16.xpose.msra.mxu0 0
        %734 = vmatprep.subr.bf16.mxu0 0
        %735 = vmatpush2.bf16.xpose.msra.mxu0 0
        %736 = vmatprep.subr.bf16.mxu0 0
        %737 = vmatpush2.bf16.xpose.msra.mxu0 0
        %738 = vmatprep.subr.bf16.mxu0 0
        %739 = vmatpush2.bf16.xpose.msra.mxu0 0
        %740 = vmatprep.subr.bf16.mxu0 0
        %741 = vmatpush2.bf16.xpose.msra.mxu0 0
        %742 = vmatprep.subr.bf16.mxu0 0
        %743 = vmatpush2.bf16.xpose.msra.mxu0 0
        %744 = vmatprep.subr.bf16.mxu0 0
        %745 = vmatpush2.bf16.xpose.msra.mxu0 0
        %746 = vmatprep.subr.bf16.mxu0 0
        %747 = vmatpush2.bf16.xpose.msra.mxu0 0
        %748 = vmatprep.mubr.bf16.mxu0 0
        %749 = vmatmul.mubr.bf16.gmra.mxu0 %v711
        %v750 = vpop.f32.mrf.mxu0
        %v751 = vadd.f32 0.0, %v750
        %v752 = vpop.f32.mrf.mxu0
        %v753 = vpop.f32.mrf.mxu0
        %v754 = vpop.f32.mrf.mxu0
        %755 = vdwg.mxu0
        %v756 = vsel %vm598, %v751, -inf
        %757 = vmax.xlane.f32.xlu0 %v756
        %v758 = vpop.xlane.xlu0 %757
        %v759 = vsub.f32 %v751, %v758
        %v760 = vmul.f32 %v759, 1.442695
        %v761 = vpow.pop %v760
        %v762 = vsel %vm598, %v761, 0.0
        %763 = vadd.xlane.f32.xlu0 %v762
        %v764 = vpop.xlane.xlu0 %763
        %v765 = vrcp.pop %v764
        %v766 = vmul.f32 %v761, %v765
        %v767 = vpack.c.bf16 %v766, %v766
        %768 = vrot.lane.b32.xlu0 %v595, 56
        %v769 = vpop.permute.xlu0 %768
        %v771 = vsel %vm598, %v767, 0
        %v774 = vsel %vm662, %v769, 0
        %776 = vmatprep.subr.bf16.mxu0 0
        %777 = vmatpush1.bf16.msra.mxu0 0
        %778 = vmatprep.subr.bf16.mxu0 0
        %779 = vmatpush1.bf16.msra.mxu0 0
        %780 = vmatprep.subr.bf16.mxu0 0
        %781 = vmatpush1.bf16.msra.mxu0 0
        %782 = vmatprep.subr.bf16.mxu0 0
        %783 = vmatpush1.bf16.msra.mxu0 0
        %784 = vmatprep.subr.bf16.mxu0 0
        %785 = vmatpush1.bf16.msra.mxu0 0
        %786 = vmatprep.subr.bf16.mxu0 0
        %787 = vmatpush1.bf16.msra.mxu0 0
        %788 = vmatprep.subr.bf16.mxu0 0
        %789 = vmatpush1.bf16.msra.mxu0 0
        %790 = vmatprep.subr.bf16.mxu0 0
        %791 = vmatpush1.bf16.msra.mxu0 %v774
        %792 = vmatprep.subr.bf16.mxu0 0
        %793 = vmatpush2.bf16.msra.mxu0 0
        %794 = vmatprep.subr.bf16.mxu0 0
        %795 = vmatpush2.bf16.msra.mxu0 0
        %796 = vmatprep.subr.bf16.mxu0 0
        %797 = vmatpush2.bf16.msra.mxu0 0
        %798 = vmatprep.subr.bf16.mxu0 0
        %799 = vmatpush2.bf16.msra.mxu0 0
        %800 = vmatprep.subr.bf16.mxu0 0
        %801 = vmatpush2.bf16.msra.mxu0 0
        %802 = vmatprep.subr.bf16.mxu0 0
        %803 = vmatpush2.bf16.msra.mxu0 0
        %804 = vmatprep.subr.bf16.mxu0 0
        %805 = vmatpush2.bf16.msra.mxu0 0
        %806 = vmatprep.subr.bf16.mxu0 0
        %807 = vmatpush2.bf16.msra.mxu0 0
        %808 = vmatprep.mubr.bf16.mxu0 0
        %809 = vmatmul.mubr.bf16.gmra.mxu0 %v771
        %v810 = vpop.f32.mrf.mxu0
        %v811 = vadd.f32 0.0, %v810
        %v812 = vpop.f32.mrf.mxu0
        %v813 = vpop.f32.mrf.mxu0
        %v814 = vpop.f32.mrf.mxu0
        %815 = vdwg.mxu0
        %816 = vrot.lane.b32.xlu0 %v595, 112
        %v817 = vpop.permute.xlu0 %816
        %818 = vrot.lane.b32.xlu0 %v595, 80
        %v819 = vpop.permute.xlu0 %818
        %v821 = vsel %vm598, %v817, 0
        %v824 = vsel %vm598, %v819, 0
        %826 = vmatprep.subr.bf16.mxu0 0
        %827 = vmatpush1.bf16.xpose.msra.mxu0 0
        %828 = vmatprep.subr.bf16.mxu0 0
        %829 = vmatpush1.bf16.xpose.msra.mxu0 0
        %830 = vmatprep.subr.bf16.mxu0 0
        %831 = vmatpush1.bf16.xpose.msra.mxu0 0
        %832 = vmatprep.subr.bf16.mxu0 0
        %833 = vmatpush1.bf16.xpose.msra.mxu0 0
        %834 = vmatprep.subr.bf16.mxu0 0
        %835 = vmatpush1.bf16.xpose.msra.mxu0 0
        %836 = vmatprep.subr.bf16.mxu0 0
        %837 = vmatpush1.bf16.xpose.msra.mxu0 0
        %838 = vmatprep.subr.bf16.mxu0 0
        %839 = vmatpush1.bf16.xpose.msra.mxu0 0
        %840 = vmatprep.subr.bf16.mxu0 0
        %841 = vmatpush1.bf16.xpose.msra.mxu0 %v824
        %842 = vmatprep.subr.bf16.mxu0 0
        %843 = vmatpush2.bf16.xpose.msra.mxu0 0
        %844 = vmatprep.subr.bf16.mxu0 0
        %845 = vmatpush2.bf16.xpose.msra.mxu0 0
        %846 = vmatprep.subr.bf16.mxu0 0
        %847 = vmatpush2.bf16.xpose.msra.mxu0 0
        %848 = vmatprep.subr.bf16.mxu0 0
        %849 = vmatpush2.bf16.xpose.msra.mxu0 0
        %850 = vmatprep.subr.bf16.mxu0 0
        %851 = vmatpush2.bf16.xpose.msra.mxu0 0
        %852 = vmatprep.subr.bf16.mxu0 0
        %853 = vmatpush2.bf16.xpose.msra.mxu0 0
        %854 = vmatprep.subr.bf16.mxu0 0
        %855 = vmatpush2.bf16.xpose.msra.mxu0 0
        %856 = vmatprep.subr.bf16.mxu0 0
        %857 = vmatpush2.bf16.xpose.msra.mxu0 0
        %858 = vmatprep.mubr.bf16.mxu0 0
        %859 = vmatmul.mubr.bf16.gmra.mxu0 %v821
        %v860 = vpop.f32.mrf.mxu0
        %v861 = vadd.f32 0.0, %v860
        %v862 = vpop.f32.mrf.mxu0
        %v863 = vpop.f32.mrf.mxu0
        %v864 = vpop.f32.mrf.mxu0
        %865 = vdwg.mxu0
        %v866 = vsel %vm598, %v861, -inf
        %867 = vmax.xlane.f32.xlu0 %v866
        %v868 = vpop.xlane.xlu0 %867
        %v869 = vsub.f32 %v861, %v868
        %v870 = vmul.f32 %v869, 1.442695
        %v871 = vpow.pop %v870
        %v872 = vsel %vm598, %v871, 0.0
        %873 = vadd.xlane.f32.xlu0 %v872
        %v874 = vpop.xlane.xlu0 %873
        %v875 = vrcp.pop %v874
        %v876 = vmul.f32 %v871, %v875
        %v877 = vpack.c.bf16 %v876, %v876
        %878 = vrot.lane.b32.xlu0 %v595, 48
        %v879 = vpop.permute.xlu0 %878
        %v881 = vsel %vm598, %v877, 0
        %v884 = vsel %vm662, %v879, 0
        %886 = vmatprep.subr.bf16.mxu0 0
        %887 = vmatpush1.bf16.msra.mxu0 0
        %888 = vmatprep.subr.bf16.mxu0 0
        %889 = vmatpush1.bf16.msra.mxu0 0
        %890 = vmatprep.subr.bf16.mxu0 0
        %891 = vmatpush1.bf16.msra.mxu0 0
        %892 = vmatprep.subr.bf16.mxu0 0
        %893 = vmatpush1.bf16.msra.mxu0 0
        %894 = vmatprep.subr.bf16.mxu0 0
        %895 = vmatpush1.bf16.msra.mxu0 0
        %896 = vmatprep.subr.bf16.mxu0 0
        %897 = vmatpush1.bf16.msra.mxu0 0
        %898 = vmatprep.subr.bf16.mxu0 0
        %899 = vmatpush1.bf16.msra.mxu0 0
        %900 = vmatprep.subr.bf16.mxu0 0
        %901 = vmatpush1.bf16.msra.mxu0 %v884
        %902 = vmatprep.subr.bf16.mxu0 0
        %903 = vmatpush2.bf16.msra.mxu0 0
        %904 = vmatprep.subr.bf16.mxu0 0
        %905 = vmatpush2.bf16.msra.mxu0 0
        %906 = vmatprep.subr.bf16.mxu0 0
        %907 = vmatpush2.bf16.msra.mxu0 0
        %908 = vmatprep.subr.bf16.mxu0 0
        %909 = vmatpush2.bf16.msra.mxu0 0
        %910 = vmatprep.subr.bf16.mxu0 0
        %911 = vmatpush2.bf16.msra.mxu0 0
        %912 = vmatprep.subr.bf16.mxu0 0
        %913 = vmatpush2.bf16.msra.mxu0 0
        %914 = vmatprep.subr.bf16.mxu0 0
        %915 = vmatpush2.bf16.msra.mxu0 0
        %916 = vmatprep.subr.bf16.mxu0 0
        %917 = vmatpush2.bf16.msra.mxu0 0
        %918 = vmatprep.mubr.bf16.mxu0 0
        %919 = vmatmul.mubr.bf16.gmra.mxu0 %v881
        %v920 = vpop.f32.mrf.mxu0
        %v921 = vadd.f32 0.0, %v920
        %v922 = vpop.f32.mrf.mxu0
        %v923 = vpop.f32.mrf.mxu0
        %v924 = vpop.f32.mrf.mxu0
        %925 = vdwg.mxu0
        %926 = vrot.lane.b32.xlu0 %v595, 104
        %v927 = vpop.permute.xlu0 %926
        %928 = vrot.lane.b32.xlu0 %v595, 72
        %v929 = vpop.permute.xlu0 %928
        %v931 = vsel %vm598, %v927, 0
        %v934 = vsel %vm598, %v929, 0
        %936 = vmatprep.subr.bf16.mxu0 0
        %937 = vmatpush1.bf16.xpose.msra.mxu0 0
        %938 = vmatprep.subr.bf16.mxu0 0
        %939 = vmatpush1.bf16.xpose.msra.mxu0 0
        %940 = vmatprep.subr.bf16.mxu0 0
        %941 = vmatpush1.bf16.xpose.msra.mxu0 0
        %942 = vmatprep.subr.bf16.mxu0 0
        %943 = vmatpush1.bf16.xpose.msra.mxu0 0
        %944 = vmatprep.subr.bf16.mxu0 0
        %945 = vmatpush1.bf16.xpose.msra.mxu0 0
        %946 = vmatprep.subr.bf16.mxu0 0
        %947 = vmatpush1.bf16.xpose.msra.mxu0 0
        %948 = vmatprep.subr.bf16.mxu0 0
        %949 = vmatpush1.bf16.xpose.msra.mxu0 0
        %950 = vmatprep.subr.bf16.mxu0 0
        %951 = vmatpush1.bf16.xpose.msra.mxu0 %v934
        %952 = vmatprep.subr.bf16.mxu0 0
        %953 = vmatpush2.bf16.xpose.msra.mxu0 0
        %954 = vmatprep.subr.bf16.mxu0 0
        %955 = vmatpush2.bf16.xpose.msra.mxu0 0
        %956 = vmatprep.subr.bf16.mxu0 0
        %957 = vmatpush2.bf16.xpose.msra.mxu0 0
        %958 = vmatprep.subr.bf16.mxu0 0
        %959 = vmatpush2.bf16.xpose.msra.mxu0 0
        %960 = vmatprep.subr.bf16.mxu0 0
        %961 = vmatpush2.bf16.xpose.msra.mxu0 0
        %962 = vmatprep.subr.bf16.mxu0 0
        %963 = vmatpush2.bf16.xpose.msra.mxu0 0
        %964 = vmatprep.subr.bf16.mxu0 0
        %965 = vmatpush2.bf16.xpose.msra.mxu0 0
        %966 = vmatprep.subr.bf16.mxu0 0
        %967 = vmatpush2.bf16.xpose.msra.mxu0 0
        %968 = vmatprep.mubr.bf16.mxu0 0
        %969 = vmatmul.mubr.bf16.gmra.mxu0 %v931
        %v970 = vpop.f32.mrf.mxu0
        %v971 = vadd.f32 0.0, %v970
        %v972 = vpop.f32.mrf.mxu0
        %v973 = vpop.f32.mrf.mxu0
        %v974 = vpop.f32.mrf.mxu0
        %975 = vdwg.mxu0
        %v976 = vsel %vm598, %v971, -inf
        %977 = vmax.xlane.f32.xlu0 %v976
        %v978 = vpop.xlane.xlu0 %977
        %v979 = vsub.f32 %v971, %v978
        %v980 = vmul.f32 %v979, 1.442695
        %v981 = vpow.pop %v980
        %v982 = vsel %vm598, %v981, 0.0
        %983 = vadd.xlane.f32.xlu0 %v982
        %v984 = vpop.xlane.xlu0 %983
        %v985 = vrcp.pop %v984
        %v986 = vmul.f32 %v981, %v985
        %v987 = vpack.c.bf16 %v986, %v986
        %988 = vrot.lane.b32.xlu0 %v595, 40
        %v989 = vpop.permute.xlu0 %988
        %v991 = vsel %vm598, %v987, 0
        %v994 = vsel %vm662, %v989, 0
        %996 = vmatprep.subr.bf16.mxu0 0
        %997 = vmatpush1.bf16.msra.mxu0 0
        %998 = vmatprep.subr.bf16.mxu0 0
        %999 = vmatpush1.bf16.msra.mxu0 0
        %1000 = vmatprep.subr.bf16.mxu0 0
        %1001 = vmatpush1.bf16.msra.mxu0 0
        %1002 = vmatprep.subr.bf16.mxu0 0
        %1003 = vmatpush1.bf16.msra.mxu0 0
        %1004 = vmatprep.subr.bf16.mxu0 0
        %1005 = vmatpush1.bf16.msra.mxu0 0
        %1006 = vmatprep.subr.bf16.mxu0 0
        %1007 = vmatpush1.bf16.msra.mxu0 0
        %1008 = vmatprep.subr.bf16.mxu0 0
        %1009 = vmatpush1.bf16.msra.mxu0 0
        %1010 = vmatprep.subr.bf16.mxu0 0
        %1011 = vmatpush1.bf16.msra.mxu0 %v994
        %1012 = vmatprep.subr.bf16.mxu0 0
        %1013 = vmatpush2.bf16.msra.mxu0 0
        %1014 = vmatprep.subr.bf16.mxu0 0
        %1015 = vmatpush2.bf16.msra.mxu0 0
        %1016 = vmatprep.subr.bf16.mxu0 0
        %1017 = vmatpush2.bf16.msra.mxu0 0
        %1018 = vmatprep.subr.bf16.mxu0 0
        %1019 = vmatpush2.bf16.msra.mxu0 0
        %1020 = vmatprep.subr.bf16.mxu0 0
        %1021 = vmatpush2.bf16.msra.mxu0 0
        %1022 = vmatprep.subr.bf16.mxu0 0
        %1023 = vmatpush2.bf16.msra.mxu0 0
        %1024 = vmatprep.subr.bf16.mxu0 0
        %1025 = vmatpush2.bf16.msra.mxu0 0
        %1026 = vmatprep.subr.bf16.mxu0 0
        %1027 = vmatpush2.bf16.msra.mxu0 0
        %1028 = vmatprep.mubr.bf16.mxu0 0
        %1029 = vmatmul.mubr.bf16.gmra.mxu0 %v991
        %v1030 = vpop.f32.mrf.mxu0
        %v1031 = vadd.f32 0.0, %v1030
        %v1032 = vpop.f32.mrf.mxu0
        %v1033 = vpop.f32.mrf.mxu0
        %v1034 = vpop.f32.mrf.mxu0
        %1035 = vdwg.mxu0
        %1037 = vrot.lane.b32.xlu0 %v811, 8
        %v1038 = vpop.permute.xlu0 %1037
        %1041 = vrot.lane.b32.xlu0 %v921, 16
        %v1042 = vpop.permute.xlu0 %1041
        %1045 = vrot.lane.b32.xlu0 %v1031, 24
        %v1046 = vpop.permute.xlu0 %1045
        %v1048 = vsel %vm598, %v701, %v1038
        %vm1049 = vcmask 130048
        %v1050 = vsel %vm1049, %v1048, %v1042
        %vm1051 = vcmask 195584
        %v1052 = vsel %vm1051, %v1050, %v1046
        %v1053 = vpack.c.bf16 %v1052, %v1052
        %vm1054 = vcmask 257024
        %1055 = vst.msk [vmem:[#allocation3] sm:$0xf] %vm1054, %v1053
        %v1056 = vld [vmem:[#allocation3] sm:$0xf]
        %v1057 = vld [vmem:[%s5] sm:$0xf]
        %v1058 = vld [vmem:[%s5 + $0x4] sm:$0xf]
        %v1059 = vld [vmem:[%s5 + $0x8] sm:$0xf]
        %v1060 = vld [vmem:[%s5 + $0xc] sm:$0xf]
        %v1061 = vld [vmem:[%s6] sm:$0x1]
        %v1063 = vlaneseq
        %v1064 = vshrl.u32 %v1063, 7
        %v1065 = vsub.s32 0, %v1064
        %v1066 = vrot.slane %v1061, %v1065
        %v1072 = vunpack.c.l.b16 %v1057
        %v1073 = vunpack.c.l.b16 %v1058
        %v1074 = vunpack.c.l.b16 %v1059
        %v1075 = vunpack.c.l.b16 %v1060
        %v1076 = vpack.c.b16 %v1073, %v1072
        %v1077 = vpack.c.b16 %v1075, %v1074
        %v1081 = vsel %vm493, %v1056, 0
        %1083 = vmatprep.subr.bf16.mxu0 0
        %1084 = vmatpush1.bf16.msra.mxu0 0
        %1085 = vmatprep.subr.bf16.mxu0 0
        %1086 = vmatpush1.bf16.msra.mxu0 0
        %1087 = vmatprep.subr.bf16.mxu0 0
        %1088 = vmatpush1.bf16.msra.mxu0 0
        %1089 = vmatprep.subr.bf16.mxu0 0
        %1090 = vmatpush1.bf16.msra.mxu0 0
        %1091 = vmatprep.subr.bf16.mxu0 0
        %1092 = vmatpush1.bf16.msra.mxu0 0
        %1093 = vmatprep.subr.bf16.mxu0 0
        %1094 = vmatpush1.bf16.msra.mxu0 0
        %1095 = vmatprep.subr.bf16.mxu0 0
        %1096 = vmatpush1.bf16.msra.mxu0 %v1077
        %1097 = vmatprep.subr.bf16.mxu0 0
        %1098 = vmatpush1.bf16.msra.mxu0 %v1076
        %1099 = vmatprep.subr.bf16.mxu0 0
        %1100 = vmatpush2.bf16.msra.mxu0 0
        %1101 = vmatprep.subr.bf16.mxu0 0
        %1102 = vmatpush2.bf16.msra.mxu0 0
        %1103 = vmatprep.subr.bf16.mxu0 0
        %1104 = vmatpush2.bf16.msra.mxu0 0
        %1105 = vmatprep.subr.bf16.mxu0 0
        %1106 = vmatpush2.bf16.msra.mxu0 0
        %1107 = vmatprep.subr.bf16.mxu0 0
        %1108 = vmatpush2.bf16.msra.mxu0 0
        %1109 = vmatprep.subr.bf16.mxu0 0
        %1110 = vmatpush2.bf16.msra.mxu0 0
        %1111 = vmatprep.subr.bf16.mxu0 0
        %1112 = vmatpush2.bf16.msra.mxu0 0
        %1113 = vmatprep.subr.bf16.mxu0 0
        %1114 = vmatpush2.bf16.msra.mxu0 0
        %1115 = vmatprep.mubr.bf16.mxu0 0
        %1116 = vmatmul.mubr.bf16.gmra.mxu0 %v1081
        %v1117 = vpop.f32.mrf.mxu0
        %v1118 = vadd.f32 %v1066, %v1117
        %v1119 = vpop.f32.mrf.mxu0
        %v1120 = vpop.f32.mrf.mxu0
        %v1121 = vpop.f32.mrf.mxu0
        %1122 = vdwg.mxu0
        %v1123 = vadd.f32 %v1118, %v490
        %v1124 = vld [vmem:[#allocation4] sm:$0x1]
        %v1125 = vld [vmem:[#allocation7] sm:$0x1]
        %v1126 = vsel %vm493, %v1123, 0.0
        %1127 = vadd.xlane.f32.xlu0 %v1126
        %v1128 = vpop.xlane.xlu0 %1127
        %v1129 = vmul.f32 %v1128, %v497
        %v1130 = vsub.f32 %v1123, %v1129
        %v1131 = vmul.f32 %v1130, %v1130
        %v1132 = vsel %vm493, %v1131, 0.0
        %1133 = vadd.xlane.f32.xlu0 %v1132
        %v1134 = vpop.xlane.xlu0 %1133
        %v1135 = vmul.f32 %v1134, %v497
        %v1136 = vadd.f32 %v1135, 1e-06
        %v1137 = vrsqrt.pop %v1136
        %v1138 = vmul.f32 %v1130, %v1137
        %v1140 = vlaneseq
        %v1141 = vshrl.u32 %v1140, 7
        %v1142 = vsub.s32 0, %v1141
        %v1143 = vrot.slane %v1124, %v1142
        %v1145 = vmul.f32 %v1138, %v1143
        %v1147 = vlaneseq
        %v1148 = vshrl.u32 %v1147, 7
        %v1149 = vsub.s32 0, %v1148
        %v1150 = vrot.slane %v1125, %v1149
        %v1152 = vadd.f32 %v1145, %v1150
        %v1153 = vpack.c.bf16 %v1152, %v1152
        %v1154 = vld [vmem:[#allocation9] sm:$0xf]
        %v1155 = vld [vmem:[#allocation9 + $0x4] sm:$0xf]
        %v1156 = vld [vmem:[#allocation9 + $0x8] sm:$0xf]
        %v1157 = vld [vmem:[#allocation9 + $0xc] sm:$0xf]
        %v1158 = vld [vmem:[#allocation10] sm:$0x1]
        %v1160 = vlaneseq
        %v1161 = vshrl.u32 %v1160, 7
        %v1162 = vsub.s32 0, %v1161
        %v1163 = vrot.slane %v1158, %v1162
        %v1169 = vunpack.c.l.b16 %v1154
        %v1170 = vunpack.c.l.b16 %v1155
        %v1171 = vunpack.c.l.b16 %v1156
        %v1172 = vunpack.c.l.b16 %v1157
        %v1173 = vpack.c.b16 %v1170, %v1169
        %v1174 = vpack.c.b16 %v1172, %v1171
        %v1178 = vsel %vm493, %v1153, 0
        %1180 = vmatprep.subr.bf16.mxu0 0
        %1181 = vmatpush1.bf16.msra.mxu0 0
        %1182 = vmatprep.subr.bf16.mxu0 0
        %1183 = vmatpush1.bf16.msra.mxu0 0
        %1184 = vmatprep.subr.bf16.mxu0 0
        %1185 = vmatpush1.bf16.msra.mxu0 0
        %1186 = vmatprep.subr.bf16.mxu0 0
        %1187 = vmatpush1.bf16.msra.mxu0 0
        %1188 = vmatprep.subr.bf16.mxu0 0
        %1189 = vmatpush1.bf16.msra.mxu0 0
        %1190 = vmatprep.subr.bf16.mxu0 0
        %1191 = vmatpush1.bf16.msra.mxu0 0
        %1192 = vmatprep.subr.bf16.mxu0 0
        %1193 = vmatpush1.bf16.msra.mxu0 %v1174
        %1194 = vmatprep.subr.bf16.mxu0 0
        %1195 = vmatpush1.bf16.msra.mxu0 %v1173
        %1196 = vmatprep.subr.bf16.mxu0 0
        %1197 = vmatpush2.bf16.msra.mxu0 0
        %1198 = vmatprep.subr.bf16.mxu0 0
        %1199 = vmatpush2.bf16.msra.mxu0 0
        %1200 = vmatprep.subr.bf16.mxu0 0
        %1201 = vmatpush2.bf16.msra.mxu0 0
        %1202 = vmatprep.subr.bf16.mxu0 0
        %1203 = vmatpush2.bf16.msra.mxu0 0
        %1204 = vmatprep.subr.bf16.mxu0 0
        %1205 = vmatpush2.bf16.msra.mxu0 0
        %1206 = vmatprep.subr.bf16.mxu0 0
        %1207 = vmatpush2.bf16.msra.mxu0 0
        %1208 = vmatprep.subr.bf16.mxu0 0
        %1209 = vmatpush2.bf16.msra.mxu0 0
        %1210 = vmatprep.subr.bf16.mxu0 0
        %1211 = vmatpush2.bf16.msra.mxu0 0
        %1212 = vmatprep.mubr.bf16.mxu0 0
        %1213 = vmatmul.mubr.bf16.gmra.mxu0 %v1178
        %v1214 = vpop.f32.mrf.mxu0
        %v1215 = vadd.f32 %v1163, %v1214
        %v1216 = vpop.f32.mrf.mxu0
        %v1217 = vpop.f32.mrf.mxu0
        %v1218 = vpop.f32.mrf.mxu0
        %1219 = vdwg.mxu0
        %v1220 = vmul.f32 %v1215, 0.5
        %v1221 = vmul.f32 %v1215, 0.70710677
        %v1222 = verf.f32.pop %v1221
        %v1223 = vadd.f32 %v1222, 1.0
        %v1224 = vmul.f32 %v1220, %v1223
        %v1225 = vpack.c.bf16 %v1224, %v1224
        %v1226 = vld [vmem:[%s11] sm:$0xf]
        %v1227 = vld [vmem:[%s11 + $0x4] sm:$0xf]
        %v1228 = vld [vmem:[%s11 + $0x8] sm:$0xf]
        %v1229 = vld [vmem:[%s11 + $0xc] sm:$0xf]
        %v1230 = vld [vmem:[%s11 + $0x10] sm:$0xf]
        %v1231 = vld [vmem:[%s11 + $0x14] sm:$0xf]
        %v1232 = vld [vmem:[%s11 + $0x18] sm:$0xf]
        %v1233 = vld [vmem:[%s11 + $0x1c] sm:$0xf]
        %v1234 = vld [vmem:[%s12] sm:$0x1]
        %v1236 = vlaneseq
        %v1237 = vshrl.u32 %v1236, 7
        %v1238 = vsub.s32 0, %v1237
        %v1239 = vrot.slane %v1234, %v1238
        %v1249 = vunpack.c.l.b16 %v1226
        %v1250 = vunpack.c.l.b16 %v1227
        %v1251 = vunpack.c.l.b16 %v1228
        %v1252 = vunpack.c.l.b16 %v1229
        %v1253 = vunpack.c.l.b16 %v1230
        %v1254 = vunpack.c.l.b16 %v1231
        %v1255 = vunpack.c.l.b16 %v1232
        %v1256 = vunpack.c.l.b16 %v1233
        %v1257 = vpack.c.b16 %v1250, %v1249
        %v1258 = vpack.c.b16 %v1252, %v1251
        %v1259 = vpack.c.b16 %v1254, %v1253
        %v1260 = vpack.c.b16 %v1256, %v1255
        %vm1265 = vcmask 523264
        %v1267 = vsel %vm1265, %v1225, 0
        %1269 = vmatprep.subr.bf16.mxu0 0
        %1270 = vmatpush1.bf16.msra.mxu0 0
        %1271 = vmatprep.subr.bf16.mxu0 0
        %1272 = vmatpush1.bf16.msra.mxu0 0
        %1273 = vmatprep.subr.bf16.mxu0 0
        %1274 = vmatpush1.bf16.msra.mxu0 0
        %1275 = vmatprep.subr.bf16.mxu0 0
        %1276 = vmatpush1.bf16.msra.mxu0 0
        %1277 = vmatprep.subr.bf16.mxu0 0
        %1278 = vmatpush1.bf16.msra.mxu0 %v1260
        %1279 = vmatprep.subr.bf16.mxu0 0
        %1280 = vmatpush1.bf16.msra.mxu0 %v1259
        %1281 = vmatprep.subr.bf16.mxu0 0
        %1282 = vmatpush1.bf16.msra.mxu0 %v1258
        %1283 = vmatprep.subr.bf16.mxu0 0
        %1284 = vmatpush1.bf16.msra.mxu0 %v1257
        %1285 = vmatprep.subr.bf16.mxu0 0
        %1286 = vmatpush2.bf16.msra.mxu0 0
        %1287 = vmatprep.subr.bf16.mxu0 0
        %1288 = vmatpush2.bf16.msra.mxu0 0
        %1289 = vmatprep.subr.bf16.mxu0 0
        %1290 = vmatpush2.bf16.msra.mxu0 0
        %1291 = vmatprep.subr.bf16.mxu0 0
        %1292 = vmatpush2.bf16.msra.mxu0 0
        %1293 = vmatprep.subr.bf16.mxu0 0
        %1294 = vmatpush2.bf16.msra.mxu0 0
        %1295 = vmatprep.subr.bf16.mxu0 0
        %1296 = vmatpush2.bf16.msra.mxu0 0
        %1297 = vmatprep.subr.bf16.mxu0 0
        %1298 = vmatpush2.bf16.msra.mxu0 0
        %1299 = vmatprep.subr.bf16.mxu0 0
        %1300 = vmatpush2.bf16.msra.mxu0 0
        %1301 = vmatprep.mubr.bf16.mxu0 0
        %1302 = vmatmul.mubr.bf16.gmra.mxu0 %v1267
        %v1303 = vpop.f32.mrf.mxu0
        %v1304 = vadd.f32 %v1239, %v1303
        %v1305 = vpop.f32.mrf.mxu0
        %v1306 = vpop.f32.mrf.mxu0
        %v1307 = vpop.f32.mrf.mxu0
        %1308 = vdwg.mxu0
        %v1309 = vadd.f32 %v1123, %v1304
        %1310 = vst.msk [vmem:[%s484] sm:$0xff] %vm493, %v1309
        %s1311 = sand.u32 %s316, 1
        %s1312 = scalar_lea.sflag [#allocation6], %s1311
        %s1313 = sand.u32 %s316, 1
        %s1314 = smul.addr %s1313, 8
        %s1315 = scalar_lea.vmem [#allocation12], %s1314
        // Predicated region
        $region89: #{tpu_custom_call.1} parent=71 // pred_check
          %p1316 = pneg %p326
        $region90: #{tpu_custom_call.1} parent=71 // pred_check_branch
          %1318 = sbr.rel (%p1316) target = $region92
        $region91: #{tpu_custom_call.1} parent=71 // pred_region
          %s1320 = ssub.s32 128, 128
          %1321 = vsyncadd %s1312, %s1320
          %s1322 = smul.addr %s30, 128
          %s1323 = scalar_lea.hbm %s13, %s1322
          %s1325 = sshll.u32 %s1315, 4
          %s1326 = int_to_ptr.vmem [resolvable:$true] %s1325
          %1328 = dma.vmem_to_hbm [thread:$0]  %s1326, 128, %s1323, %s1312
        $region92: #{tpu_custom_call.1} parent=71 // pred_fallthru
          _
      $region72: #{tpu_custom_call.1} parent=5 // pred_fallthru
        _
      %p1329 = scmp.le.s32.totalorder 2, %s25
      // Predicated region
      $region93: #{tpu_custom_call.1} parent=5 // pred_check
        %p1330 = pneg %p1329
      $region94: #{tpu_custom_call.1} parent=5 // pred_check_branch
        %1332 = sbr.rel (%p1330) target = $region96
      $region95: #{tpu_custom_call.1} parent=5 // pred_region
        %s1333 = ssub.s32 %s25, 2
        // Predicated region
        $region97: #{tpu_custom_call.1} parent=95 // pred_check
          %p1334 = pneg %p332
        $region98: #{tpu_custom_call.1} parent=95 // pred_check_branch
          %1336 = sbr.rel (%p1334) target = $region100
        $region99: #{tpu_custom_call.1} parent=95 // pred_region
          %s1337 = sand.u32 %s317, 1
          %s1338 = scalar_lea.sflag [#allocation6], %s1337
          %s1339 = sand.u32 %s317, 1
          %s1340 = smul.addr %s1339, 8
          %s1341 = scalar_lea.vmem [#allocation12], %s1340
          %1342 = dma.done %s1338, 128
        $region100: #{tpu_custom_call.1} parent=95 // pred_fallthru
          _
      $region96: #{tpu_custom_call.1} parent=5 // pred_fallthru
        _
    $region6: #{tpu_custom_call.1} parent=1 // loop_footer
      %s29 = sadd.s32 1, %s25
    $region7: #{tpu_custom_call.1} parent=1 // loop_footer_branch
      %24 = sbr.rel target = $region3
    $region8: #{tpu_custom_call.1} parent=1 // loop_exit
      _
    %1343 = vsyncpa [#allocation5], 1
    %s1344 = scalar_lea.sflag [#allocation5], 1
    %1345 = vsyncpa %s1344, 1
    %1346 = vsyncpa [#allocation8], 1
    %1347 = vsyncpa [#allocation11], 1
    %1348 = vsyncpa [#allocation6], 1
    %s1349 = scalar_lea.sflag [#allocation6], 1
    %1350 = vsyncpa %s1349, 1

</llo_original>
